<compile_context>
chip_gen: v7x
topology: tpu7x:2x2x1
jax: 0.10.0
libtpu: 0.0.40
codegen_flags: <defaults>
</compile_context>

<pallas_src>
import functools

import jax
import jax.numpy as jnp
from jax import lax
from jax.experimental import pallas as pl
from jax.experimental.pallas import tpu as pltpu


BN_EPS = 1e-5         # torch.nn.BatchNorm1d default eps
NORM_EPS = 1e-12      # torch.nn.functional.normalize default eps

_WEIGHT_ORDER = ("w0", "w1", "w2", "w3", "wp", "gamma", "beta")


# ------------------------------ kernel --------------------------------------

def _make_siamese_kernel(n_branches, n_nodes, n_graphs, in_dim, hidden):
    """Kernel processing `n_branches` Siamese branches in one grid step.

    n_branches=2 (v5e/v6e): both branches in one body -> weight matmuls run at
    M = 2*N (full MXU tiles) and the two independent A@h chains interleave.
    n_branches=1 (v7x):     one branch per grid step; the "parallel" grid axis
    shards the pair across the two TensorCores.
    """
    npg = n_nodes // n_graphs          # nodes per graph (contiguous, equal size)
    bn = n_branches * n_nodes

    def kernel(x_ref, a_ref, w0_ref, w1_ref, w2_ref, w3_ref,
               wp_ref, gamma_ref, beta_ref, z_ref):
        a = a_ref[...]                                       # (B, N, N)  bf16
        x = x_ref[...]                                       # (B, N, F)  bf16

        # ---- GCN layer 0, re-associated:  A @ (x @ W0)  (no lane padding) ----
        t = jnp.dot(x.reshape(bn, in_dim), w0_ref[...],
                    preferred_element_type=jnp.float32)       # (B*N, D) f32
        t = t.reshape(n_branches, n_nodes, hidden).astype(jnp.bfloat16)
        h = jnp.einsum("bij,bjd->bid", a, t,
                       preferred_element_type=jnp.float32)    # per-branch A @ t
        h = jnp.maximum(h, 0.0).astype(jnp.bfloat16)

        # ---- GCN layers 1..3:  (A @ h) @ W, ReLU between layers ----
        def gcn_layer(h_bf16, w_ref, relu):
            m = jnp.einsum("bij,bjd->bid", a, h_bf16,
                           preferred_element_type=jnp.float32)
            o = jnp.dot(m.astype(jnp.bfloat16).reshape(bn, hidden), w_ref[...],
                        preferred_element_type=jnp.float32)
            o = o.reshape(n_branches, n_nodes, hidden)
            if relu:
                o = jnp.maximum(o, 0.0)
            return o

        h = gcn_layer(h, w1_ref, relu=True).astype(jnp.bfloat16)
        h = gcn_layer(h, w2_ref, relu=True).astype(jnp.bfloat16)
        h = gcn_layer(h, w3_ref, relu=False)                  # (B, N, D) f32

        # ---- readout: global_add_pool via sublane segment-sum (XLU) ----
        # TODO(synk): ragged PyG batches need a seg-matrix / scalar-prefetch
        # offset pooling path; this reshape assumes contiguous equal-size graphs.
        pooled = h.reshape(n_branches, n_graphs, npg, hidden).sum(axis=2)

        # ---- project: Linear(2E, 2E, bias=False), weight pre-transposed ----
        p = jnp.dot(pooled.astype(jnp.bfloat16).reshape(n_branches * n_graphs,
                                                        hidden),
                    wp_ref[...], preferred_element_type=jnp.float32)
        p = p.reshape(n_branches, n_graphs, hidden)

        # ---- BatchNorm1d (training mode): two-pass per-branch batch stats ----
        mean = jnp.mean(p, axis=1, keepdims=True)
        var = jnp.mean(jnp.square(p - mean), axis=1, keepdims=True)
        scale = gamma_ref[...] * lax.rsqrt(var + BN_EPS)
        y = (p - mean) * scale + beta_ref[...]

        # ---- F.normalize(dim=-1): one rsqrt + mul (EUP), no divide ----
        sumsq = jnp.sum(y * y, axis=-1, keepdims=True)
        inv_norm = lax.rsqrt(jnp.maximum(sumsq, NORM_EPS * NORM_EPS))
        z_ref[...] = (y * inv_norm).astype(z_ref.dtype)

    return kernel


# ------------------------------ wrapper -------------------------------------

def _nbytes(x):
    return int(x.size) * x.dtype.itemsize


def _branches_per_step():
    """Branches per grid step: 1 on v7x-class chips (2 TensorCores -> shard the
    pair across cores via the 'parallel' grid), 2 on single-TC chips (fuse both
    branches so the weight matmuls see M = 2*N)."""
    try:
        kind = jax.devices()[0].device_kind.lower()
    except Exception:
        return 2
    return 1 if ("v7" in kind or "7x" in kind) else 2


def _siamese_pair(x2, a2, params, n_graphs, branches_per_step):
    """Run both Siamese branches in a single pallas_call."""
    _, n, fin = x2.shape
    d = params["wp"].shape[1]
    b = branches_per_step
    grid = (2 // b,)

    # per-branch(-block) inputs / output
    x_spec = pl.BlockSpec((b, n, fin), lambda i: (i, 0, 0))
    a_spec = pl.BlockSpec((b, n, n), lambda i: (i, 0, 0))
    z_spec = pl.BlockSpec((b, n_graphs, d), lambda i: (i, 0, 0))

    # weights / BN params: constant index_map -> DMA'd once, VMEM-resident.
    # (pl.Buffered(1) on these would halve their VMEM footprint, but the whole
    #  working set is <1 MiB at these shapes, so it is left at the default.)
    def shared(arr):
        return pl.BlockSpec(arr.shape, lambda i: (0, 0))

    weight_specs = [shared(params[k]) for k in _WEIGHT_ORDER]

    # advisory cost estimate (both branches)
    flops_per_branch = (
        2 * n * fin * d + 2 * n * n * d            # layer 0: x@W0, A@(xW0)
        + 3 * (2 * n * n * d + 2 * n * d * d)      # layers 1-3
        + n * d                                    # add-pool (sublane adds)
        + 2 * n_graphs * d * d)                    # projection
    bytes_in = (_nbytes(x2) + _nbytes(a2)
                + sum(_nbytes(params[k]) for k in _WEIGHT_ORDER))
    cost = pl.CostEstimate(
        flops=2 * flops_per_branch,
        transcendentals=2 * (d + n_graphs),
        bytes_accessed=bytes_in + 2 * n_graphs * d * 4)

    # TODO(synk): large-N growth path — tile the dense [N, N] adjacency with a
    # reduction grid axis + f32 VMEM accumulator, sizing the A row-panel so
    # (panel x 2 pipeline buffers + resident h + weights + accumulator) stays
    # under ~24-32 MiB: the budget must target v7x's 64 MiB VMEM, not the
    # 128 MiB of v5e/v6e.  At these shapes the whole working set is <1 MiB.
    kernel = _make_siamese_kernel(b, n, n_graphs, fin, d)
    return pl.pallas_call(
        kernel,
        out_shape=jax.ShapeDtypeStruct((2, n_graphs, d), jnp.float32),
        grid=grid,
        in_specs=[x_spec, a_spec] + weight_specs,
        out_specs=z_spec,
        compiler_params=pltpu.CompilerParams(
            dimension_semantics=("parallel",),
            vmem_limit_bytes=32 * 1024 * 1024),
        cost_estimate=cost,
    )(x2, a2, *[params[k] for k in _WEIGHT_ORDER])


@functools.partial(jax.jit, static_argnames=("n_graphs",))
def siamese_ple_forward(x2, a2, params, n_graphs):
    """SiamesePLE.forward for a pre-stacked bf16 graph pair -> (z1, z2).

    x2/a2 are the two graph batches stacked on a leading axis of size 2 and
    already cast to bf16 (prepare_pair); params come from prepare_params.
    Keeping all prep outside this function keeps the hot path to one
    pallas_call (the kernel itself is only ~70 MFLOP at these shapes).
    """
    z = _siamese_pair(x2, a2, params, n_graphs, _branches_per_step())
    return z[0], z[1]


# -------------------- one-time prep (outside the hot path) ------------------

def prepare_params(params):
    """One-time parameter prep: matmul weights -> bf16; BN affine stays f32."""
    p = {k: jnp.asarray(params[k], jnp.bfloat16)
         for k in ("w0", "w1", "w2", "w3", "wp")}
    p["gamma"] = jnp.asarray(params["gamma"], jnp.float32)
    p["beta"] = jnp.asarray(params["beta"], jnp.float32)
    return p


def prepare_pair(g1, g2):
    """One-time (data-pipeline side) prep: stack the two branches, cast to bf16.

    TODO(synk): real PyG pairs have ragged node counts; a production pipeline
    should pad/bucket both batches to a common N before handing them over.
    """
    x2 = jnp.stack([g1["x"], g2["x"]]).astype(jnp.bfloat16)
    a2 = jnp.stack([g1["adj"], g2["adj"]]).astype(jnp.bfloat16)
    return x2, a2


# ----------------------------- glue / setup ---------------------------------

def make_params(key, in_dim, hidden):
    """Deterministic synthetic parameters (shapes follow the module __init__)."""
    ks = jax.random.split(key, 5)
    scale = 0.05
    return {
        "w0": scale * jax.random.normal(ks[0], (in_dim, hidden), jnp.float32),
        "w1": scale * jax.random.normal(ks[1], (hidden, hidden), jnp.float32),
        "w2": scale * jax.random.normal(ks[2], (hidden, hidden), jnp.float32),
        "w3": scale * jax.random.normal(ks[3], (hidden, hidden), jnp.float32),
        # project: nn.Linear(2E, 2E, bias=False); stored pre-transposed so the
        # kernel does pooled @ Wp  (== pooled @ W.T in PyTorch convention).
        "wp": scale * jax.random.normal(ks[4], (hidden, hidden), jnp.float32),
        # BatchNorm1d(2E) default init
        "gamma": jnp.ones((1, hidden), jnp.float32),
        "beta": jnp.zeros((1, hidden), jnp.float32),
    }


def make_graph_batch(key, n_nodes, n_graphs, in_dim):
    """Random dense graph batch: features + symmetric-normalized adjacency.
    Graphs are contiguous and equal-sized (block-diagonal adjacency)."""
    kx, ka = jax.random.split(key)
    x = jax.random.normal(kx, (n_nodes, in_dim), jnp.float32)

    nodes_per_graph = n_nodes // n_graphs
    batch_id = jnp.arange(n_nodes) // nodes_per_graph          # [N]
    raw = (jax.random.uniform(ka, (n_nodes, n_nodes)) < 0.3).astype(jnp.float32)
    same_graph = (batch_id[:, None] == batch_id[None, :]).astype(jnp.float32)
    adj = jnp.maximum(raw, raw.T) * same_graph + jnp.eye(n_nodes, dtype=jnp.float32)
    adj = jnp.minimum(adj, 1.0)
    deg = jnp.sum(adj, axis=-1)
    d_inv_sqrt = 1.0 / jnp.sqrt(deg)
    adj_norm = adj * d_inv_sqrt[:, None] * d_inv_sqrt[None, :]
    return {"x": x, "adj": adj_norm}


def _reference_branch(g, params, n_graphs):
    """Pure-JAX f32 reference of one branch (tolerance validation)."""
    a, h = g["adj"], g["x"]
    h = jnp.maximum((a @ h) @ params["w0"], 0.0)
    h = jnp.maximum((a @ h) @ params["w1"], 0.0)
    h = jnp.maximum((a @ h) @ params["w2"], 0.0)
    h = (a @ h) @ params["w3"]
    pooled = h.reshape(n_graphs, h.shape[0] // n_graphs, -1).sum(axis=1)
    p = pooled @ params["wp"]
    mean = jnp.mean(p, axis=0, keepdims=True)
    var = jnp.mean((p - mean) ** 2, axis=0, keepdims=True)
    y = (p - mean) / jnp.sqrt(var + BN_EPS) * params["gamma"] + params["beta"]
    norm = jnp.linalg.norm(y, axis=-1, keepdims=True)
    return y / jnp.maximum(norm, NORM_EPS)


if __name__ == "__main__":
    # small, MXU-friendly shapes: emb_dim=64 -> projection dim 2*emb_dim = 128,
    # 128 nodes split across 8 graphs per batch, node feature dim 32.
    EMB_DIM = 64
    HIDDEN = 2 * EMB_DIM      # 128
    IN_DIM = 32
    N_NODES = 128
    N_GRAPHS = 8

    root = jax.random.PRNGKey(0)
    k_params, k_g1, k_g2 = jax.random.split(root, 3)

    params = make_params(k_params, IN_DIM, HIDDEN)
    g1 = make_graph_batch(k_g1, N_NODES, N_GRAPHS, IN_DIM)
    g2 = make_graph_batch(k_g2, N_NODES, N_GRAPHS, IN_DIM)

    # one-time prep, kept OUT of the jitted hot path (per perf review)
    params_dev = prepare_params(params)
    x2, a2 = prepare_pair(g1, g2)
    jax.block_until_ready((x2, a2))

    z1, z2 = siamese_ple_forward(x2, a2, params_dev, N_GRAPHS)
    jax.block_until_ready((z1, z2))

    assert z1.shape == (N_GRAPHS, HIDDEN) and z2.shape == (N_GRAPHS, HIDDEN)
    # rows are L2-normalized (normalization done in f32 inside the kernel)
    assert jnp.allclose(jnp.linalg.norm(z1, axis=-1), 1.0, atol=1e-3)
    assert jnp.allclose(jnp.linalg.norm(z2, axis=-1), 1.0, atol=1e-3)

    # validate against a pure-JAX f32 reference (bf16 MXU inputs -> small drift)
    r1 = _reference_branch(g1, params, N_GRAPHS)
    r2 = _reference_branch(g2, params, N_GRAPHS)
    assert float(jnp.max(jnp.abs(z1 - r1))) < 5e-2
    assert float(jnp.max(jnp.abs(z2 - r2))) < 5e-2

    print("KERNEL_OK")
</pallas_src>

<mosaic_0001>
module attributes {stable_mosaic.version = 11 : i64} {
  func.func @kernel(%arg0: i32, %arg1: memref<2x128x32xbf16, #tpu.memory_space<vmem>>, %arg2: memref<2x128x128xbf16, #tpu.memory_space<vmem>>, %arg3: memref<32x128xbf16, #tpu.memory_space<vmem>>, %arg4: memref<128x128xbf16, #tpu.memory_space<vmem>>, %arg5: memref<128x128xbf16, #tpu.memory_space<vmem>>, %arg6: memref<128x128xbf16, #tpu.memory_space<vmem>>, %arg7: memref<128x128xbf16, #tpu.memory_space<vmem>>, %arg8: memref<1x128xf32, #tpu.memory_space<vmem>>, %arg9: memref<1x128xf32, #tpu.memory_space<vmem>>, %arg10: memref<2x8x128xf32, #tpu.memory_space<vmem>>) attributes {dimension_semantics = [#tpu.dimension_semantics<parallel>], iteration_bounds = array<i64: 1>, scalar_prefetch = 0 : i64, scratch_operands = 0 : i64, tpu.core_type = #tpu.core_type<tc>, window_params = [{transform_indices = @transform_0, window_bounds = array<i64: 2, 128, 32>}, {transform_indices = @transform_1, window_bounds = array<i64: 2, 128, 128>}, {pipeline_mode = #tpu.pipeline_mode<synchronous>, transform_indices = @transform_2, window_bounds = array<i64: 32, 128>}, {pipeline_mode = #tpu.pipeline_mode<synchronous>, transform_indices = @transform_3, window_bounds = array<i64: 128, 128>}, {pipeline_mode = #tpu.pipeline_mode<synchronous>, transform_indices = @transform_4, window_bounds = array<i64: 128, 128>}, {pipeline_mode = #tpu.pipeline_mode<synchronous>, transform_indices = @transform_5, window_bounds = array<i64: 128, 128>}, {pipeline_mode = #tpu.pipeline_mode<synchronous>, transform_indices = @transform_6, window_bounds = array<i64: 128, 128>}, {pipeline_mode = #tpu.pipeline_mode<synchronous>, transform_indices = @transform_7, window_bounds = array<i64: 1, 128>}, {pipeline_mode = #tpu.pipeline_mode<synchronous>, transform_indices = @transform_8, window_bounds = array<i64: 1, 128>}, {transform_indices = @transform_9, window_bounds = array<i64: 2, 8, 128>}]} {
    %c0 = arith.constant 0 : index
    %c0_0 = arith.constant 0 : index
    %c0_1 = arith.constant 0 : index
    %0 = vector.load %arg2[%c0, %c0_0, %c0_1] : memref<2x128x128xbf16, #tpu.memory_space<vmem>>, vector<2x128x128xbf16>
    %c0_2 = arith.constant 0 : index
    %c0_3 = arith.constant 0 : index
    %c0_4 = arith.constant 0 : index
    %1 = vector.load %arg1[%c0_2, %c0_3, %c0_4] : memref<2x128x32xbf16, #tpu.memory_space<vmem>>, vector<2x128x32xbf16>
    %2 = vector.shape_cast %1 : vector<2x128x32xbf16> to vector<256x32xbf16>
    %c0_5 = arith.constant 0 : index
    %c0_6 = arith.constant 0 : index
    %3 = vector.load %arg3[%c0_5, %c0_6] : memref<32x128xbf16, #tpu.memory_space<vmem>>, vector<32x128xbf16>
    %cst = arith.constant dense<0.000000e+00> : vector<256x128xf32>
    %4 = tpu.matmul %2, %3, %cst {dimension_numbers = #tpu.dot_dimension_numbers<[1], [0], [0], [1], [0, 0, 1, 1], [], []>} : vector<256x32xbf16>, vector<32x128xbf16>, vector<256x128xf32> -> vector<256x128xf32>
    %5 = vector.shape_cast %4 : vector<256x128xf32> to vector<2x128x128xf32>
    %6 = arith.truncf %5 : vector<2x128x128xf32> to vector<2x128x128xbf16>
    "tpu.trace_start"() <{level = 10 : i32, message = "bij,bjd->bid"}> : () -> ()
    %cst_7 = arith.constant dense<0.000000e+00> : vector<2x128x128xf32>
    %7 = tpu.matmul %0, %6, %cst_7 {dimension_numbers = #tpu.dot_dimension_numbers<[2], [1], [1], [2], [0, 0, 0, 1, 1, 2], [0], [0]>} : vector<2x128x128xbf16>, vector<2x128x128xbf16>, vector<2x128x128xf32> -> vector<2x128x128xf32>
    "tpu.trace_stop"() : () -> ()
    %cst_8 = arith.constant 0.000000e+00 : f32
    %8 = vector.broadcast %cst_8 : f32 to vector<2x128x128xf32>
    %9 = arith.maximumf %7, %8 : vector<2x128x128xf32>
    %10 = arith.truncf %9 : vector<2x128x128xf32> to vector<2x128x128xbf16>
    "tpu.trace_start"() <{level = 10 : i32, message = "bij,bjd->bid"}> : () -> ()
    %cst_9 = arith.constant dense<0.000000e+00> : vector<2x128x128xf32>
    %11 = tpu.matmul %0, %10, %cst_9 {dimension_numbers = #tpu.dot_dimension_numbers<[2], [1], [1], [2], [0, 0, 0, 1, 1, 2], [0], [0]>} : vector<2x128x128xbf16>, vector<2x128x128xbf16>, vector<2x128x128xf32> -> vector<2x128x128xf32>
    "tpu.trace_stop"() : () -> ()
    %12 = arith.truncf %11 : vector<2x128x128xf32> to vector<2x128x128xbf16>
    %13 = vector.shape_cast %12 : vector<2x128x128xbf16> to vector<256x128xbf16>
    %c0_10 = arith.constant 0 : index
    %c0_11 = arith.constant 0 : index
    %14 = vector.load %arg4[%c0_10, %c0_11] : memref<128x128xbf16, #tpu.memory_space<vmem>>, vector<128x128xbf16>
    %cst_12 = arith.constant dense<0.000000e+00> : vector<256x128xf32>
    %15 = tpu.matmul %13, %14, %cst_12 {dimension_numbers = #tpu.dot_dimension_numbers<[1], [0], [0], [1], [0, 0, 1, 1], [], []>} : vector<256x128xbf16>, vector<128x128xbf16>, vector<256x128xf32> -> vector<256x128xf32>
    %16 = vector.shape_cast %15 : vector<256x128xf32> to vector<2x128x128xf32>
    %cst_13 = arith.constant 0.000000e+00 : f32
    %17 = vector.broadcast %cst_13 : f32 to vector<2x128x128xf32>
    %18 = arith.maximumf %16, %17 : vector<2x128x128xf32>
    %19 = arith.truncf %18 : vector<2x128x128xf32> to vector<2x128x128xbf16>
    "tpu.trace_start"() <{level = 10 : i32, message = "bij,bjd->bid"}> : () -> ()
    %cst_14 = arith.constant dense<0.000000e+00> : vector<2x128x128xf32>
    %20 = tpu.matmul %0, %19, %cst_14 {dimension_numbers = #tpu.dot_dimension_numbers<[2], [1], [1], [2], [0, 0, 0, 1, 1, 2], [0], [0]>} : vector<2x128x128xbf16>, vector<2x128x128xbf16>, vector<2x128x128xf32> -> vector<2x128x128xf32>
    "tpu.trace_stop"() : () -> ()
    %21 = arith.truncf %20 : vector<2x128x128xf32> to vector<2x128x128xbf16>
    %22 = vector.shape_cast %21 : vector<2x128x128xbf16> to vector<256x128xbf16>
    %c0_15 = arith.constant 0 : index
    %c0_16 = arith.constant 0 : index
    %23 = vector.load %arg5[%c0_15, %c0_16] : memref<128x128xbf16, #tpu.memory_space<vmem>>, vector<128x128xbf16>
    %cst_17 = arith.constant dense<0.000000e+00> : vector<256x128xf32>
    %24 = tpu.matmul %22, %23, %cst_17 {dimension_numbers = #tpu.dot_dimension_numbers<[1], [0], [0], [1], [0, 0, 1, 1], [], []>} : vector<256x128xbf16>, vector<128x128xbf16>, vector<256x128xf32> -> vector<256x128xf32>
    %25 = vector.shape_cast %24 : vector<256x128xf32> to vector<2x128x128xf32>
    %cst_18 = arith.constant 0.000000e+00 : f32
    %26 = vector.broadcast %cst_18 : f32 to vector<2x128x128xf32>
    %27 = arith.maximumf %25, %26 : vector<2x128x128xf32>
    %28 = arith.truncf %27 : vector<2x128x128xf32> to vector<2x128x128xbf16>
    "tpu.trace_start"() <{level = 10 : i32, message = "bij,bjd->bid"}> : () -> ()
    %cst_19 = arith.constant dense<0.000000e+00> : vector<2x128x128xf32>
    %29 = tpu.matmul %0, %28, %cst_19 {dimension_numbers = #tpu.dot_dimension_numbers<[2], [1], [1], [2], [0, 0, 0, 1, 1, 2], [0], [0]>} : vector<2x128x128xbf16>, vector<2x128x128xbf16>, vector<2x128x128xf32> -> vector<2x128x128xf32>
    "tpu.trace_stop"() : () -> ()
    %30 = arith.truncf %29 : vector<2x128x128xf32> to vector<2x128x128xbf16>
    %31 = vector.shape_cast %30 : vector<2x128x128xbf16> to vector<256x128xbf16>
    %c0_20 = arith.constant 0 : index
    %c0_21 = arith.constant 0 : index
    %32 = vector.load %arg6[%c0_20, %c0_21] : memref<128x128xbf16, #tpu.memory_space<vmem>>, vector<128x128xbf16>
    %cst_22 = arith.constant dense<0.000000e+00> : vector<256x128xf32>
    %33 = tpu.matmul %31, %32, %cst_22 {dimension_numbers = #tpu.dot_dimension_numbers<[1], [0], [0], [1], [0, 0, 1, 1], [], []>} : vector<256x128xbf16>, vector<128x128xbf16>, vector<256x128xf32> -> vector<256x128xf32>
    %34 = vector.shape_cast %33 : vector<256x128xf32> to vector<2x128x128xf32>
    %35 = vector.shape_cast %34 : vector<2x128x128xf32> to vector<2x8x16x128xf32>
    %cst_23 = arith.constant dense<0.000000e+00> : vector<2x8x128xf32>
    %36 = vector.multi_reduction <add>, %35, %cst_23 [2] : vector<2x8x16x128xf32> to vector<2x8x128xf32>
    %37 = arith.truncf %36 : vector<2x8x128xf32> to vector<2x8x128xbf16>
    %38 = vector.shape_cast %37 : vector<2x8x128xbf16> to vector<16x128xbf16>
    %c0_24 = arith.constant 0 : index
    %c0_25 = arith.constant 0 : index
    %39 = vector.load %arg7[%c0_24, %c0_25] : memref<128x128xbf16, #tpu.memory_space<vmem>>, vector<128x128xbf16>
    %cst_26 = arith.constant dense<0.000000e+00> : vector<16x128xf32>
    %40 = tpu.matmul %38, %39, %cst_26 {dimension_numbers = #tpu.dot_dimension_numbers<[1], [0], [0], [1], [0, 0, 1, 1], [], []>} : vector<16x128xbf16>, vector<128x128xbf16>, vector<16x128xf32> -> vector<16x128xf32>
    %41 = vector.shape_cast %40 : vector<16x128xf32> to vector<2x8x128xf32>
    %cst_27 = arith.constant dense<0.000000e+00> : vector<2x128xf32>
    %42 = vector.multi_reduction <add>, %41, %cst_27 [1] : vector<2x8x128xf32> to vector<2x128xf32>
    %43 = vector.shape_cast %42 : vector<2x128xf32> to vector<2x1x128xf32>
    %cst_28 = arith.constant 8.000000e+00 : f32
    %44 = vector.broadcast %cst_28 : f32 to vector<2x1x128xf32>
    %45 = arith.divf %43, %44 : vector<2x1x128xf32>
    %46 = vector.broadcast %45 : vector<2x1x128xf32> to vector<2x8x128xf32>
    %47 = arith.subf %41, %46 : vector<2x8x128xf32>
    %48 = arith.mulf %47, %47 : vector<2x8x128xf32>
    %cst_29 = arith.constant dense<0.000000e+00> : vector<2x128xf32>
    %49 = vector.multi_reduction <add>, %48, %cst_29 [1] : vector<2x8x128xf32> to vector<2x128xf32>
    %50 = vector.shape_cast %49 : vector<2x128xf32> to vector<2x1x128xf32>
    %cst_30 = arith.constant 8.000000e+00 : f32
    %51 = vector.broadcast %cst_30 : f32 to vector<2x1x128xf32>
    %52 = arith.divf %50, %51 : vector<2x1x128xf32>
    %c0_31 = arith.constant 0 : index
    %c0_32 = arith.constant 0 : index
    %53 = vector.load %arg8[%c0_31, %c0_32] : memref<1x128xf32, #tpu.memory_space<vmem>>, vector<1x128xf32>
    %cst_33 = arith.constant 9.99999974E-6 : f32
    %54 = vector.broadcast %cst_33 : f32 to vector<2x1x128xf32>
    %55 = arith.addf %52, %54 : vector<2x1x128xf32>
    %56 = math.rsqrt %55 : vector<2x1x128xf32>
    %57 = vector.shape_cast %53 : vector<1x128xf32> to vector<1x1x128xf32>
    %58 = vector.broadcast %57 : vector<1x1x128xf32> to vector<2x1x128xf32>
    %59 = arith.mulf %58, %56 : vector<2x1x128xf32>
    %60 = vector.broadcast %45 : vector<2x1x128xf32> to vector<2x8x128xf32>
    %61 = arith.subf %41, %60 : vector<2x8x128xf32>
    %62 = vector.broadcast %59 : vector<2x1x128xf32> to vector<2x8x128xf32>
    %63 = arith.mulf %61, %62 : vector<2x8x128xf32>
    %c0_34 = arith.constant 0 : index
    %c0_35 = arith.constant 0 : index
    %64 = vector.load %arg9[%c0_34, %c0_35] : memref<1x128xf32, #tpu.memory_space<vmem>>, vector<1x128xf32>
    %65 = vector.shape_cast %64 : vector<1x128xf32> to vector<1x1x128xf32>
    %66 = vector.broadcast %65 : vector<1x1x128xf32> to vector<2x8x128xf32>
    %67 = arith.addf %63, %66 : vector<2x8x128xf32>
    %68 = arith.mulf %67, %67 : vector<2x8x128xf32>
    %cst_36 = arith.constant dense<0.000000e+00> : vector<2x8xf32>
    %69 = vector.multi_reduction <add>, %68, %cst_36 [2] : vector<2x8x128xf32> to vector<2x8xf32>
    %70 = vector.shape_cast %69 : vector<2x8xf32> to vector<2x8x1xf32>
    %cst_37 = arith.constant 1.000000e-24 : f32
    %71 = vector.broadcast %cst_37 : f32 to vector<2x8x1xf32>
    %72 = arith.maximumf %70, %71 : vector<2x8x1xf32>
    %73 = math.rsqrt %72 : vector<2x8x1xf32>
    %74 = vector.broadcast %73 : vector<2x8x1xf32> to vector<2x8x128xf32>
    %75 = arith.mulf %67, %74 : vector<2x8x128xf32>
    %c0_38 = arith.constant 0 : index
    %c0_39 = arith.constant 0 : index
    %c0_40 = arith.constant 0 : index
    %76 = vector.load %arg10[%c0_38, %c0_39, %c0_40] : memref<2x8x128xf32, #tpu.memory_space<vmem>>, vector<2x8x128xf32>
    tpu.vector_store %arg10[%c0_38, %c0_39, %c0_40], %75 {strides = array<i32>} : memref<2x8x128xf32, #tpu.memory_space<vmem>>, vector<2x8x128xf32>,
    return
  }
  func.func @transform_0(%arg0: i32) -> (i32, i32, i32) {
    %c0_i32 = arith.constant 0 : i32
    %c0_i32_0 = arith.constant 0 : i32
    %c0_i32_1 = arith.constant 0 : i32
    return %arg0, %c0_i32, %c0_i32_0 : i32, i32, i32
  }
  func.func @transform_1(%arg0: i32) -> (i32, i32, i32) {
    %c0_i32 = arith.constant 0 : i32
    %c0_i32_0 = arith.constant 0 : i32
    %c0_i32_1 = arith.constant 0 : i32
    return %arg0, %c0_i32, %c0_i32_0 : i32, i32, i32
  }
  func.func @transform_2(%arg0: i32) -> (i32, i32) {
    %c0_i32 = arith.constant 0 : i32
    %c0_i32_0 = arith.constant 0 : i32
    %c0_i32_1 = arith.constant 0 : i32
    return %c0_i32, %c0_i32_0 : i32, i32
  }
  func.func @transform_3(%arg0: i32) -> (i32, i32) {
    %c0_i32 = arith.constant 0 : i32
    %c0_i32_0 = arith.constant 0 : i32
    %c0_i32_1 = arith.constant 0 : i32
    return %c0_i32, %c0_i32_0 : i32, i32
  }
  func.func @transform_4(%arg0: i32) -> (i32, i32) {
    %c0_i32 = arith.constant 0 : i32
    %c0_i32_0 = arith.constant 0 : i32
    %c0_i32_1 = arith.constant 0 : i32
    return %c0_i32, %c0_i32_0 : i32, i32
  }
  func.func @transform_5(%arg0: i32) -> (i32, i32) {
    %c0_i32 = arith.constant 0 : i32
    %c0_i32_0 = arith.constant 0 : i32
    %c0_i32_1 = arith.constant 0 : i32
    return %c0_i32, %c0_i32_0 : i32, i32
  }
  func.func @transform_6(%arg0: i32) -> (i32, i32) {
    %c0_i32 = arith.constant 0 : i32
    %c0_i32_0 = arith.constant 0 : i32
    %c0_i32_1 = arith.constant 0 : i32
    return %c0_i32, %c0_i32_0 : i32, i32
  }
  func.func @transform_7(%arg0: i32) -> (i32, i32) {
    %c0_i32 = arith.constant 0 : i32
    %c0_i32_0 = arith.constant 0 : i32
    %c0_i32_1 = arith.constant 0 : i32
    return %c0_i32, %c0_i32_0 : i32, i32
  }
  func.func @transform_8(%arg0: i32) -> (i32, i32) {
    %c0_i32 = arith.constant 0 : i32
    %c0_i32_0 = arith.constant 0 : i32
    %c0_i32_1 = arith.constant 0 : i32
    return %c0_i32, %c0_i32_0 : i32, i32
  }
  func.func @transform_9(%arg0: i32) -> (i32, i32, i32) {
    %c0_i32 = arith.constant 0 : i32
    %c0_i32_0 = arith.constant 0 : i32
    %c0_i32_1 = arith.constant 0 : i32
    return %arg0, %c0_i32, %c0_i32_0 : i32, i32, i32
  }
}

</mosaic_0001>

<llo_original>
// kernel: siamese_ple_forward.1
$region0: #{siamese_ple_forward.1}
  #allocation0 [shape = 'u32[]', space=smem, size = 0x4, offset = 0x4, fixed_abs, tag = 'smem constant byte address 0x4 - core index']
  #allocation1 [shape = 'u32[144,128]{1,0:T(1,128)}', space=vmem, size = 0x12000, scoped, tag = 'internal scratch']
  %s0 = inlined_call_operand.vmem [shape: bf16[2,128,32], index: 0, kind: input, shape index: {}]
  %s1 = inlined_call_operand.vmem [shape: bf16[2,128,128], index: 1, kind: input, shape index: {}]
  %s2 = inlined_call_operand.vmem [shape: bf16[32,128], index: 2, kind: input, shape index: {}]
  %s3 = inlined_call_operand.hbm [shape: bf16[128,128], index: 3, kind: input, shape index: {}]
  %s4 = inlined_call_operand.hbm [shape: bf16[128,128], index: 4, kind: input, shape index: {}]
  %s5 = inlined_call_operand.hbm [shape: bf16[128,128], index: 5, kind: input, shape index: {}]
  %s6 = inlined_call_operand.hbm [shape: bf16[128,128], index: 6, kind: input, shape index: {}]
  %s7 = inlined_call_operand.vmem [shape: f32[1,128], index: 7, kind: input, shape index: {}]
  %s8 = inlined_call_operand.vmem [shape: f32[1,128], index: 8, kind: input, shape index: {}]
  %s9 = inlined_call_operand.vmem [shape: f32[2,8,128], index: 9, kind: output, shape index: {}]
  %s10 = sld [smem:[#allocation0]]
  $region62: #{siamese_ple_forward.1} parent=0
    _
  %s12 = ssub.s32 1, %s10
  %s13 = scalar_select 0, %s12, %s10
  $region1: #{siamese_ple_forward.1} parent=0
    #allocation2 [shape = 'u8[32768]{0}', space=vmem, size = 0x8000, scoped, tag = 'input window, operand 3, single buffered']
    #allocation3 [shape = 's32[1]{0}', space=sflag, size = 0x4, scoped, tag = 'scoped memory for siamese_ple_forward.1']
    #allocation4 [shape = 'u8[32768]{0}', space=vmem, size = 0x8000, scoped, tag = 'input window, operand 4, single buffered']
    #allocation5 [shape = 's32[1]{0}', space=sflag, size = 0x4, scoped, tag = 'scoped memory for siamese_ple_forward.1']
    #allocation6 [shape = 'u8[32768]{0}', space=vmem, size = 0x8000, scoped, tag = 'input window, operand 5, single buffered']
    #allocation7 [shape = 'u8[32768]{0}', space=vmem, size = 0x8000, scoped, tag = 'input window, operand 6, single buffered']
    #allocation8 [shape = 's32[1]{0}', space=sflag, size = 0x4, scoped, tag = 'scoped memory for siamese_ple_forward.1']
    %14 = vsyncpa [#allocation3], 0
    %15 = vsyncpa [#allocation5], 0
    %16 = vsyncpa [#allocation8], 0
    // Predicated region
    $region2: #{siamese_ple_forward.1} parent=1 // pred_check
      _
    $region3: #{siamese_ple_forward.1} parent=1 // pred_check_branch
      %18 = sbr.rel (0) target = $region5
    $region4: #{siamese_ple_forward.1} parent=1 // pred_region
      _
    $region5: #{siamese_ple_forward.1} parent=1 // pred_fallthru
      _
    // Predicated region
    $region6: #{siamese_ple_forward.1} parent=1 // pred_check
      _
    $region7: #{siamese_ple_forward.1} parent=1 // pred_check_branch
      %20 = sbr.rel (0) target = $region9
    $region8: #{siamese_ple_forward.1} parent=1 // pred_region
      _
    $region9: #{siamese_ple_forward.1} parent=1 // pred_fallthru
      _
    // Predicated region
    $region10: #{siamese_ple_forward.1} parent=1 // pred_check
      _
    $region11: #{siamese_ple_forward.1} parent=1 // pred_check_branch
      %22 = sbr.rel (0) target = $region13
    $region12: #{siamese_ple_forward.1} parent=1 // pred_region
      _
    $region13: #{siamese_ple_forward.1} parent=1 // pred_fallthru
      _
    // Predicated region
    $region14: #{siamese_ple_forward.1} parent=1 // pred_check
      _
    $region15: #{siamese_ple_forward.1} parent=1 // pred_check_branch
      %24 = sbr.rel (0) target = $region17
    $region16: #{siamese_ple_forward.1} parent=1 // pred_region
      %s26 = ssub.s32 1024, 1024
      %27 = vsyncadd [#allocation3], %s26
      %s28 = sshll.u32 [#allocation2], 4
      %s29 = int_to_ptr.vmem [resolvable:$true] %s28
      %34 = dma.hbm_to_vmem [thread:$0]  %s3, 1024, %s29, [#allocation3], 64, 64, 4
    $region17: #{siamese_ple_forward.1} parent=1 // pred_fallthru
      _
    // Predicated region
    $region18: #{siamese_ple_forward.1} parent=1 // pred_check
      _
    $region19: #{siamese_ple_forward.1} parent=1 // pred_check_branch
      %36 = sbr.rel (0) target = $region21
    $region20: #{siamese_ple_forward.1} parent=1 // pred_region
      %s38 = ssub.s32 1024, 1024
      %39 = vsyncadd [#allocation5], %s38
      %s40 = sshll.u32 [#allocation4], 4
      %s41 = int_to_ptr.vmem [resolvable:$true] %s40
      %46 = dma.hbm_to_vmem [thread:$0]  %s4, 1024, %s41, [#allocation5], 64, 64, 4
    $region21: #{siamese_ple_forward.1} parent=1 // pred_fallthru
      _
    // Predicated region
    $region22: #{siamese_ple_forward.1} parent=1 // pred_check
      _
    $region23: #{siamese_ple_forward.1} parent=1 // pred_check_branch
      %48 = sbr.rel (0) target = $region25
    $region24: #{siamese_ple_forward.1} parent=1 // pred_region
      %s50 = ssub.s32 1024, 1024
      %51 = vsyncadd [#allocation5], %s50
      %s52 = sshll.u32 [#allocation6], 4
      %s53 = int_to_ptr.vmem [resolvable:$true] %s52
      %58 = dma.hbm_to_vmem [thread:$0]  %s5, 1024, %s53, [#allocation5], 64, 64, 4
    $region25: #{siamese_ple_forward.1} parent=1 // pred_fallthru
      _
    // Predicated region
    $region26: #{siamese_ple_forward.1} parent=1 // pred_check
      _
    $region27: #{siamese_ple_forward.1} parent=1 // pred_check_branch
      %60 = sbr.rel (0) target = $region29
    $region28: #{siamese_ple_forward.1} parent=1 // pred_region
      %s62 = ssub.s32 1024, 1024
      %63 = vsyncadd [#allocation8], %s62
      %s64 = sshll.u32 [#allocation7], 4
      %s65 = int_to_ptr.vmem [resolvable:$true] %s64
      %70 = dma.hbm_to_vmem [thread:$0]  %s6, 1024, %s65, [#allocation8], 64, 64, 4
    $region29: #{siamese_ple_forward.1} parent=1 // pred_fallthru
      _
    // Predicated region
    $region30: #{siamese_ple_forward.1} parent=1 // pred_check
      _
    $region31: #{siamese_ple_forward.1} parent=1 // pred_check_branch
      %72 = sbr.rel (0) target = $region33
    $region32: #{siamese_ple_forward.1} parent=1 // pred_region
      _
    $region33: #{siamese_ple_forward.1} parent=1 // pred_fallthru
      _
    // Predicated region
    $region34: #{siamese_ple_forward.1} parent=1 // pred_check
      _
    $region35: #{siamese_ple_forward.1} parent=1 // pred_check_branch
      %74 = sbr.rel (0) target = $region37
    $region36: #{siamese_ple_forward.1} parent=1 // pred_region
      _
    $region37: #{siamese_ple_forward.1} parent=1 // pred_fallthru
      _
    // Predicated region
    $region38: #{siamese_ple_forward.1} parent=1 // pred_check
      _
    $region39: #{siamese_ple_forward.1} parent=1 // pred_check_branch
      %76 = sbr.rel (0) target = $region41
    $region40: #{siamese_ple_forward.1} parent=1 // pred_region
      %77 = dma.done [#allocation3], 1024
    $region41: #{siamese_ple_forward.1} parent=1 // pred_fallthru
      _
    // Predicated region
    $region42: #{siamese_ple_forward.1} parent=1 // pred_check
      _
    $region43: #{siamese_ple_forward.1} parent=1 // pred_check_branch
      %79 = sbr.rel (0) target = $region45
    $region44: #{siamese_ple_forward.1} parent=1 // pred_region
      %80 = dma.done [#allocation5], 1024
    $region45: #{siamese_ple_forward.1} parent=1 // pred_fallthru
      _
    // Predicated region
    $region46: #{siamese_ple_forward.1} parent=1 // pred_check
      _
    $region47: #{siamese_ple_forward.1} parent=1 // pred_check_branch
      %82 = sbr.rel (0) target = $region49
    $region48: #{siamese_ple_forward.1} parent=1 // pred_region
      %83 = dma.done [#allocation5], 1024
    $region49: #{siamese_ple_forward.1} parent=1 // pred_fallthru
      _
    // Predicated region
    $region50: #{siamese_ple_forward.1} parent=1 // pred_check
      _
    $region51: #{siamese_ple_forward.1} parent=1 // pred_check_branch
      %85 = sbr.rel (0) target = $region53
    $region52: #{siamese_ple_forward.1} parent=1 // pred_region
      %86 = dma.done [#allocation8], 1024
    $region53: #{siamese_ple_forward.1} parent=1 // pred_fallthru
      _
    %v88 = vld [vmem:[%s1] sm:$0xf]
    %v89 = vld [vmem:[%s1 + $0x4] sm:$0xf]
    %v90 = vld [vmem:[%s1 + $0x8] sm:$0xf]
    %v91 = vld [vmem:[%s1 + $0xc] sm:$0xf]
    %v92 = vld [vmem:[%s1 + $0x10] sm:$0xf]
    %v93 = vld [vmem:[%s1 + $0x14] sm:$0xf]
    %v94 = vld [vmem:[%s1 + $0x18] sm:$0xf]
    %v95 = vld [vmem:[%s1 + $0x1c] sm:$0xf]
    %v96 = vld [vmem:[%s1 + $0x20] sm:$0xf]
    %v97 = vld [vmem:[%s1 + $0x24] sm:$0xf]
    %v98 = vld [vmem:[%s1 + $0x28] sm:$0xf]
    %v99 = vld [vmem:[%s1 + $0x2c] sm:$0xf]
    %v100 = vld [vmem:[%s1 + $0x30] sm:$0xf]
    %v101 = vld [vmem:[%s1 + $0x34] sm:$0xf]
    %v102 = vld [vmem:[%s1 + $0x38] sm:$0xf]
    %v103 = vld [vmem:[%s1 + $0x3c] sm:$0xf]
    %v104 = vld [vmem:[%s1 + $0x40] sm:$0xf]
    %v105 = vld [vmem:[%s1 + $0x44] sm:$0xf]
    %v106 = vld [vmem:[%s1 + $0x48] sm:$0xf]
    %v107 = vld [vmem:[%s1 + $0x4c] sm:$0xf]
    %v108 = vld [vmem:[%s1 + $0x50] sm:$0xf]
    %v109 = vld [vmem:[%s1 + $0x54] sm:$0xf]
    %v110 = vld [vmem:[%s1 + $0x58] sm:$0xf]
    %v111 = vld [vmem:[%s1 + $0x5c] sm:$0xf]
    %v112 = vld [vmem:[%s1 + $0x60] sm:$0xf]
    %v113 = vld [vmem:[%s1 + $0x64] sm:$0xf]
    %v114 = vld [vmem:[%s1 + $0x68] sm:$0xf]
    %v115 = vld [vmem:[%s1 + $0x6c] sm:$0xf]
    %v116 = vld [vmem:[%s1 + $0x70] sm:$0xf]
    %v117 = vld [vmem:[%s1 + $0x74] sm:$0xf]
    %v118 = vld [vmem:[%s1 + $0x78] sm:$0xf]
    %v119 = vld [vmem:[%s1 + $0x7c] sm:$0xf]
    %v120 = vld [vmem:[%s0] sm:$0xf]
    %v121 = vld [vmem:[%s0 + $0x4] sm:$0xf]
    %v122 = vld [vmem:[%s0 + $0x8] sm:$0xf]
    %v123 = vld [vmem:[%s0 + $0xc] sm:$0xf]
    %v124 = vld [vmem:[%s0 + $0x10] sm:$0xf]
    %v125 = vld [vmem:[%s0 + $0x14] sm:$0xf]
    %v126 = vld [vmem:[%s0 + $0x18] sm:$0xf]
    %v127 = vld [vmem:[%s0 + $0x1c] sm:$0xf]
    %v128 = vld [vmem:[%s0 + $0x20] sm:$0xf]
    %v129 = vld [vmem:[%s0 + $0x24] sm:$0xf]
    %v130 = vld [vmem:[%s0 + $0x28] sm:$0xf]
    %v131 = vld [vmem:[%s0 + $0x2c] sm:$0xf]
    %v132 = vld [vmem:[%s0 + $0x30] sm:$0xf]
    %v133 = vld [vmem:[%s0 + $0x34] sm:$0xf]
    %v134 = vld [vmem:[%s0 + $0x38] sm:$0xf]
    %v135 = vld [vmem:[%s0 + $0x3c] sm:$0xf]
    %v136 = vld [vmem:[%s0 + $0x40] sm:$0xf]
    %v137 = vld [vmem:[%s0 + $0x44] sm:$0xf]
    %v138 = vld [vmem:[%s0 + $0x48] sm:$0xf]
    %v139 = vld [vmem:[%s0 + $0x4c] sm:$0xf]
    %v140 = vld [vmem:[%s0 + $0x50] sm:$0xf]
    %v141 = vld [vmem:[%s0 + $0x54] sm:$0xf]
    %v142 = vld [vmem:[%s0 + $0x58] sm:$0xf]
    %v143 = vld [vmem:[%s0 + $0x5c] sm:$0xf]
    %v144 = vld [vmem:[%s0 + $0x60] sm:$0xf]
    %v145 = vld [vmem:[%s0 + $0x64] sm:$0xf]
    %v146 = vld [vmem:[%s0 + $0x68] sm:$0xf]
    %v147 = vld [vmem:[%s0 + $0x6c] sm:$0xf]
    %v148 = vld [vmem:[%s0 + $0x70] sm:$0xf]
    %v149 = vld [vmem:[%s0 + $0x74] sm:$0xf]
    %v150 = vld [vmem:[%s0 + $0x78] sm:$0xf]
    %v151 = vld [vmem:[%s0 + $0x7c] sm:$0xf]
    %v152 = vld [vmem:[%s2] sm:$0xf]
    %v153 = vld [vmem:[%s2 + $0x4] sm:$0xf]
    %v154 = vld [vmem:[%s2 + $0x8] sm:$0xf]
    %v155 = vld [vmem:[%s2 + $0xc] sm:$0xf]
    %v188 = vunpack.c.l.b16 %v120
    %v189 = vunpack.c.l.b16 %v121
    %v190 = vunpack.c.l.b16 %v122
    %v191 = vunpack.c.l.b16 %v123
    %v192 = vunpack.c.l.b16 %v124
    %v193 = vunpack.c.l.b16 %v125
    %v194 = vunpack.c.l.b16 %v126
    %v195 = vunpack.c.l.b16 %v127
    %v196 = vunpack.c.l.b16 %v128
    %v197 = vunpack.c.l.b16 %v129
    %v198 = vunpack.c.l.b16 %v130
    %v199 = vunpack.c.l.b16 %v131
    %v200 = vunpack.c.l.b16 %v132
    %v201 = vunpack.c.l.b16 %v133
    %v202 = vunpack.c.l.b16 %v134
    %v203 = vunpack.c.l.b16 %v135
    %v204 = vunpack.c.l.b16 %v136
    %v205 = vunpack.c.l.b16 %v137
    %v206 = vunpack.c.l.b16 %v138
    %v207 = vunpack.c.l.b16 %v139
    %v208 = vunpack.c.l.b16 %v140
    %v209 = vunpack.c.l.b16 %v141
    %v210 = vunpack.c.l.b16 %v142
    %v211 = vunpack.c.l.b16 %v143
    %v212 = vunpack.c.l.b16 %v144
    %v213 = vunpack.c.l.b16 %v145
    %v214 = vunpack.c.l.b16 %v146
    %v215 = vunpack.c.l.b16 %v147
    %v216 = vunpack.c.l.b16 %v148
    %v217 = vunpack.c.l.b16 %v149
    %v218 = vunpack.c.l.b16 %v150
    %v219 = vunpack.c.l.b16 %v151
    %v220 = vpack.c.b16 %v189, %v188
    %v221 = vpack.c.b16 %v191, %v190
    %v222 = vpack.c.b16 %v193, %v192
    %v223 = vpack.c.b16 %v195, %v194
    %v224 = vpack.c.b16 %v197, %v196
    %v225 = vpack.c.b16 %v199, %v198
    %v226 = vpack.c.b16 %v201, %v200
    %v227 = vpack.c.b16 %v203, %v202
    %v228 = vpack.c.b16 %v205, %v204
    %v229 = vpack.c.b16 %v207, %v206
    %v230 = vpack.c.b16 %v209, %v208
    %v231 = vpack.c.b16 %v211, %v210
    %v232 = vpack.c.b16 %v213, %v212
    %v233 = vpack.c.b16 %v215, %v214
    %v234 = vpack.c.b16 %v217, %v216
    %v235 = vpack.c.b16 %v219, %v218
    %v240 = vunpack.c.l.b16 %v152
    %v241 = vunpack.c.l.b16 %v153
    %v242 = vunpack.c.l.b16 %v154
    %v243 = vunpack.c.l.b16 %v155
    %v244 = vpack.c.b16 %v241, %v240
    %v245 = vpack.c.b16 %v243, %v242
    %vm248 = vcmask 261120
    %v250 = vsel %vm248, %v220, 0
    %v253 = vsel %vm248, %v221, 0
    %v256 = vsel %vm248, %v222, 0
    %v259 = vsel %vm248, %v223, 0
    %v262 = vsel %vm248, %v224, 0
    %v265 = vsel %vm248, %v225, 0
    %v268 = vsel %vm248, %v226, 0
    %v271 = vsel %vm248, %v227, 0
    %v274 = vsel %vm248, %v228, 0
    %v277 = vsel %vm248, %v229, 0
    %v280 = vsel %vm248, %v230, 0
    %v283 = vsel %vm248, %v231, 0
    %v286 = vsel %vm248, %v232, 0
    %v289 = vsel %vm248, %v233, 0
    %v292 = vsel %vm248, %v234, 0
    %v295 = vsel %vm248, %v235, 0
    %297 = vmatprep.subr.bf16.mxu0 0
    %298 = vmatpush1.bf16.msra.mxu0 %v244
    %299 = vmatprep.subr.bf16.mxu0 0
    %300 = vmatpush1.bf16.msra.mxu0 %v245
    %301 = vmatprep.subr.bf16.mxu0 0
    %302 = vmatpush1.bf16.msra.mxu0 0
    %303 = vmatprep.subr.bf16.mxu0 0
    %304 = vmatpush1.bf16.msra.mxu0 0
    %305 = vmatprep.subr.bf16.mxu0 0
    %306 = vmatpush1.bf16.msra.mxu0 0
    %307 = vmatprep.subr.bf16.mxu0 0
    %308 = vmatpush1.bf16.msra.mxu0 0
    %309 = vmatprep.subr.bf16.mxu0 0
    %310 = vmatpush1.bf16.msra.mxu0 0
    %311 = vmatprep.subr.bf16.mxu0 0
    %312 = vmatpush1.bf16.msra.mxu0 0
    %313 = vmatprep.subr.bf16.mxu0 0
    %314 = vmatpush1.bf16.msra.mxu0 0
    %315 = vmatprep.subr.bf16.mxu0 0
    %316 = vmatpush1.bf16.msra.mxu0 0
    %317 = vmatprep.subr.bf16.mxu0 0
    %318 = vmatpush1.bf16.msra.mxu0 0
    %319 = vmatprep.subr.bf16.mxu0 0
    %320 = vmatpush1.bf16.msra.mxu0 0
    %321 = vmatprep.subr.bf16.mxu0 0
    %322 = vmatpush1.bf16.msra.mxu0 0
    %323 = vmatprep.subr.bf16.mxu0 0
    %324 = vmatpush1.bf16.msra.mxu0 0
    %325 = vmatprep.subr.bf16.mxu0 0
    %326 = vmatpush1.bf16.msra.mxu0 0
    %327 = vmatprep.subr.bf16.mxu0 0
    %328 = vmatpush1.bf16.msra.mxu0 0
    %329 = vmatprep.mubr.bf16.mxu0 0
    %330 = vmatmul.mubr.bf16.gmra.mrb[0].mxu0 %v250
    %v331 = vpop.f32.mrb[0].mxu0
    %v332 = vadd.f32 0.0, %v331
    %v333 = vpop.f32.mrb[0].mxu0
    %v334 = vpop.f32.mrb[0].mxu0
    %v335 = vadd.f32 0.0, %v334
    %v336 = vpop.f32.mrb[0].mxu0
    %337 = vmatprep.mubr.bf16.mxu0 0
    %338 = vmatmul.mubr.bf16.gmra.mrb[0].mxu0 %v253
    %v339 = vpop.f32.mrb[0].mxu0
    %v340 = vadd.f32 0.0, %v339
    %v341 = vpop.f32.mrb[0].mxu0
    %v342 = vpop.f32.mrb[0].mxu0
    %v343 = vadd.f32 0.0, %v342
    %v344 = vpop.f32.mrb[0].mxu0
    %345 = vmatprep.mubr.bf16.mxu0 0
    %346 = vmatmul.mubr.bf16.gmra.mrb[0].mxu0 %v256
    %v347 = vpop.f32.mrb[0].mxu0
    %v348 = vadd.f32 0.0, %v347
    %v349 = vpop.f32.mrb[0].mxu0
    %v350 = vpop.f32.mrb[0].mxu0
    %v351 = vadd.f32 0.0, %v350
    %v352 = vpop.f32.mrb[0].mxu0
    %353 = vmatprep.mubr.bf16.mxu0 0
    %354 = vmatmul.mubr.bf16.gmra.mrb[0].mxu0 %v259
    %v355 = vpop.f32.mrb[0].mxu0
    %v356 = vadd.f32 0.0, %v355
    %v357 = vpop.f32.mrb[0].mxu0
    %v358 = vpop.f32.mrb[0].mxu0
    %v359 = vadd.f32 0.0, %v358
    %v360 = vpop.f32.mrb[0].mxu0
    %361 = vmatprep.mubr.bf16.mxu0 0
    %362 = vmatmul.mubr.bf16.gmra.mrb[0].mxu0 %v262
    %v363 = vpop.f32.mrb[0].mxu0
    %v364 = vadd.f32 0.0, %v363
    %v365 = vpop.f32.mrb[0].mxu0
    %v366 = vpop.f32.mrb[0].mxu0
    %v367 = vadd.f32 0.0, %v366
    %v368 = vpop.f32.mrb[0].mxu0
    %369 = vmatprep.mubr.bf16.mxu0 0
    %370 = vmatmul.mubr.bf16.gmra.mrb[0].mxu0 %v265
    %v371 = vpop.f32.mrb[0].mxu0
    %v372 = vadd.f32 0.0, %v371
    %v373 = vpop.f32.mrb[0].mxu0
    %v374 = vpop.f32.mrb[0].mxu0
    %v375 = vadd.f32 0.0, %v374
    %v376 = vpop.f32.mrb[0].mxu0
    %377 = vmatprep.mubr.bf16.mxu0 0
    %378 = vmatmul.mubr.bf16.gmra.mrb[0].mxu0 %v268
    %v379 = vpop.f32.mrb[0].mxu0
    %v380 = vadd.f32 0.0, %v379
    %v381 = vpop.f32.mrb[0].mxu0
    %v382 = vpop.f32.mrb[0].mxu0
    %v383 = vadd.f32 0.0, %v382
    %v384 = vpop.f32.mrb[0].mxu0
    %385 = vmatprep.mubr.bf16.mxu0 0
    %386 = vmatmul.mubr.bf16.gmra.mrb[0].mxu0 %v271
    %v387 = vpop.f32.mrb[0].mxu0
    %v388 = vadd.f32 0.0, %v387
    %v389 = vpop.f32.mrb[0].mxu0
    %v390 = vpop.f32.mrb[0].mxu0
    %v391 = vadd.f32 0.0, %v390
    %v392 = vpop.f32.mrb[0].mxu0
    %393 = vmatprep.mubr.bf16.mxu0 0
    %394 = vmatmul.mubr.bf16.gmra.mrb[0].mxu0 %v274
    %v395 = vpop.f32.mrb[0].mxu0
    %v396 = vadd.f32 0.0, %v395
    %v397 = vpop.f32.mrb[0].mxu0
    %v398 = vpop.f32.mrb[0].mxu0
    %v399 = vadd.f32 0.0, %v398
    %v400 = vpop.f32.mrb[0].mxu0
    %401 = vmatprep.mubr.bf16.mxu0 0
    %402 = vmatmul.mubr.bf16.gmra.mrb[0].mxu0 %v277
    %v403 = vpop.f32.mrb[0].mxu0
    %v404 = vadd.f32 0.0, %v403
    %v405 = vpop.f32.mrb[0].mxu0
    %v406 = vpop.f32.mrb[0].mxu0
    %v407 = vadd.f32 0.0, %v406
    %v408 = vpop.f32.mrb[0].mxu0
    %409 = vmatprep.mubr.bf16.mxu0 0
    %410 = vmatmul.mubr.bf16.gmra.mrb[0].mxu0 %v280
    %v411 = vpop.f32.mrb[0].mxu0
    %v412 = vadd.f32 0.0, %v411
    %v413 = vpop.f32.mrb[0].mxu0
    %v414 = vpop.f32.mrb[0].mxu0
    %v415 = vadd.f32 0.0, %v414
    %v416 = vpop.f32.mrb[0].mxu0
    %417 = vmatprep.mubr.bf16.mxu0 0
    %418 = vmatmul.mubr.bf16.gmra.mrb[0].mxu0 %v283
    %v419 = vpop.f32.mrb[0].mxu0
    %v420 = vadd.f32 0.0, %v419
    %v421 = vpop.f32.mrb[0].mxu0
    %v422 = vpop.f32.mrb[0].mxu0
    %v423 = vadd.f32 0.0, %v422
    %v424 = vpop.f32.mrb[0].mxu0
    %425 = vmatprep.mubr.bf16.mxu0 0
    %426 = vmatmul.mubr.bf16.gmra.mrb[0].mxu0 %v286
    %v427 = vpop.f32.mrb[0].mxu0
    %v428 = vadd.f32 0.0, %v427
    %v429 = vpop.f32.mrb[0].mxu0
    %v430 = vpop.f32.mrb[0].mxu0
    %v431 = vadd.f32 0.0, %v430
    %v432 = vpop.f32.mrb[0].mxu0
    %433 = vmatprep.mubr.bf16.mxu0 0
    %434 = vmatmul.mubr.bf16.gmra.mrb[0].mxu0 %v289
    %v435 = vpop.f32.mrb[0].mxu0
    %v436 = vadd.f32 0.0, %v435
    %v437 = vpop.f32.mrb[0].mxu0
    %v438 = vpop.f32.mrb[0].mxu0
    %v439 = vadd.f32 0.0, %v438
    %v440 = vpop.f32.mrb[0].mxu0
    %441 = vmatprep.mubr.bf16.mxu0 0
    %442 = vmatmul.mubr.bf16.gmra.mrb[0].mxu0 %v292
    %v443 = vpop.f32.mrb[0].mxu0
    %v444 = vadd.f32 0.0, %v443
    %v445 = vpop.f32.mrb[0].mxu0
    %v446 = vpop.f32.mrb[0].mxu0
    %v447 = vadd.f32 0.0, %v446
    %v448 = vpop.f32.mrb[0].mxu0
    %449 = vmatprep.mubr.bf16.mxu0 0
    %450 = vmatmul.mubr.bf16.gmra.mrb[0].mxu0 %v295
    %v451 = vpop.f32.mrb[0].mxu0
    %v452 = vadd.f32 0.0, %v451
    %v453 = vpop.f32.mrb[0].mxu0
    %v454 = vpop.f32.mrb[0].mxu0
    %v455 = vadd.f32 0.0, %v454
    %v456 = vpop.f32.mrb[0].mxu0
    %457 = vdwg.mxu0
    %v458 = vpack.c.bf16 %v335, %v332
    %v459 = vpack.c.bf16 %v343, %v340
    %v460 = vpack.c.bf16 %v351, %v348
    %v461 = vpack.c.bf16 %v359, %v356
    %v462 = vpack.c.bf16 %v367, %v364
    %v463 = vpack.c.bf16 %v375, %v372
    %v464 = vpack.c.bf16 %v383, %v380
    %v465 = vpack.c.bf16 %v391, %v388
    %v466 = vpack.c.bf16 %v399, %v396
    %v467 = vpack.c.bf16 %v407, %v404
    %v468 = vpack.c.bf16 %v415, %v412
    %v469 = vpack.c.bf16 %v423, %v420
    %v470 = vpack.c.bf16 %v431, %v428
    %v471 = vpack.c.bf16 %v439, %v436
    %v472 = vpack.c.bf16 %v447, %v444
    %v473 = vpack.c.bf16 %v455, %v452
    %v490 = vunpack.c.l.b16 %v88
    %v491 = vunpack.c.l.b16 %v89
    %v492 = vunpack.c.l.b16 %v90
    %v493 = vunpack.c.l.b16 %v91
    %v494 = vunpack.c.l.b16 %v92
    %v495 = vunpack.c.l.b16 %v93
    %v496 = vunpack.c.l.b16 %v94
    %v497 = vunpack.c.l.b16 %v95
    %v498 = vunpack.c.l.b16 %v96
    %v499 = vunpack.c.l.b16 %v97
    %v500 = vunpack.c.l.b16 %v98
    %v501 = vunpack.c.l.b16 %v99
    %v502 = vunpack.c.l.b16 %v100
    %v503 = vunpack.c.l.b16 %v101
    %v504 = vunpack.c.l.b16 %v102
    %v505 = vunpack.c.l.b16 %v103
    %v506 = vpack.c.b16 %v491, %v490
    %v507 = vpack.c.b16 %v493, %v492
    %v508 = vpack.c.b16 %v495, %v494
    %v509 = vpack.c.b16 %v497, %v496
    %v510 = vpack.c.b16 %v499, %v498
    %v511 = vpack.c.b16 %v501, %v500
    %v512 = vpack.c.b16 %v503, %v502
    %v513 = vpack.c.b16 %v505, %v504
    %522 = vmatprep.subr.bf16.mxu0 0
    %523 = vmatpush1.bf16.msra.mxu0 %v458
    %524 = vmatprep.subr.bf16.mxu0 0
    %525 = vmatpush1.bf16.msra.mxu0 %v459
    %526 = vmatprep.subr.bf16.mxu0 0
    %527 = vmatpush1.bf16.msra.mxu0 %v460
    %528 = vmatprep.subr.bf16.mxu0 0
    %529 = vmatpush1.bf16.msra.mxu0 %v461
    %530 = vmatprep.subr.bf16.mxu0 0
    %531 = vmatpush1.bf16.msra.mxu0 %v462
    %532 = vmatprep.subr.bf16.mxu0 0
    %533 = vmatpush1.bf16.msra.mxu0 %v463
    %534 = vmatprep.subr.bf16.mxu0 0
    %535 = vmatpush1.bf16.msra.mxu0 %v464
    %536 = vmatprep.subr.bf16.mxu0 0
    %537 = vmatpush1.bf16.msra.mxu0 %v465
    %538 = vmatprep.subr.bf16.mxu0 0
    %539 = vmatpush1.bf16.msra.mxu0 0
    %540 = vmatprep.subr.bf16.mxu0 0
    %541 = vmatpush1.bf16.msra.mxu0 0
    %542 = vmatprep.subr.bf16.mxu0 0
    %543 = vmatpush1.bf16.msra.mxu0 0
    %544 = vmatprep.subr.bf16.mxu0 0
    %545 = vmatpush1.bf16.msra.mxu0 0
    %546 = vmatprep.subr.bf16.mxu0 0
    %547 = vmatpush1.bf16.msra.mxu0 0
    %548 = vmatprep.subr.bf16.mxu0 0
    %549 = vmatpush1.bf16.msra.mxu0 0
    %550 = vmatprep.subr.bf16.mxu0 0
    %551 = vmatpush1.bf16.msra.mxu0 0
    %552 = vmatprep.subr.bf16.mxu0 0
    %553 = vmatpush1.bf16.msra.mxu0 0
    %554 = vmatprep.mubr.bf16.mxu0 0
    %555 = vmatmul.mubr.bf16.gmra.mrb[0].mxu0 %v506
    %v556 = vpop.f32.mrb[0].mxu0
    %v557 = vadd.f32 0.0, %v556
    %v558 = vpop.f32.mrb[0].mxu0
    %v559 = vpop.f32.mrb[0].mxu0
    %v560 = vadd.f32 0.0, %v559
    %v561 = vpop.f32.mrb[0].mxu0
    %562 = vmatprep.mubr.bf16.mxu0 0
    %563 = vmatmul.mubr.bf16.gmra.mrb[0].mxu0 %v507
    %v564 = vpop.f32.mrb[0].mxu0
    %v565 = vadd.f32 0.0, %v564
    %v566 = vpop.f32.mrb[0].mxu0
    %v567 = vpop.f32.mrb[0].mxu0
    %v568 = vadd.f32 0.0, %v567
    %v569 = vpop.f32.mrb[0].mxu0
    %570 = vmatprep.mubr.bf16.mxu0 0
    %571 = vmatmul.mubr.bf16.gmra.mrb[0].mxu0 %v508
    %v572 = vpop.f32.mrb[0].mxu0
    %v573 = vadd.f32 0.0, %v572
    %v574 = vpop.f32.mrb[0].mxu0
    %v575 = vpop.f32.mrb[0].mxu0
    %v576 = vadd.f32 0.0, %v575
    %v577 = vpop.f32.mrb[0].mxu0
    %578 = vmatprep.mubr.bf16.mxu0 0
    %579 = vmatmul.mubr.bf16.gmra.mrb[0].mxu0 %v509
    %v580 = vpop.f32.mrb[0].mxu0
    %v581 = vadd.f32 0.0, %v580
    %v582 = vpop.f32.mrb[0].mxu0
    %v583 = vpop.f32.mrb[0].mxu0
    %v584 = vadd.f32 0.0, %v583
    %v585 = vpop.f32.mrb[0].mxu0
    %586 = vmatprep.mubr.bf16.mxu0 0
    %587 = vmatmul.mubr.bf16.gmra.mrb[0].mxu0 %v510
    %v588 = vpop.f32.mrb[0].mxu0
    %v589 = vadd.f32 0.0, %v588
    %v590 = vpop.f32.mrb[0].mxu0
    %v591 = vpop.f32.mrb[0].mxu0
    %v592 = vadd.f32 0.0, %v591
    %v593 = vpop.f32.mrb[0].mxu0
    %594 = vmatprep.mubr.bf16.mxu0 0
    %595 = vmatmul.mubr.bf16.gmra.mrb[0].mxu0 %v511
    %v596 = vpop.f32.mrb[0].mxu0
    %v597 = vadd.f32 0.0, %v596
    %v598 = vpop.f32.mrb[0].mxu0
    %v599 = vpop.f32.mrb[0].mxu0
    %v600 = vadd.f32 0.0, %v599
    %v601 = vpop.f32.mrb[0].mxu0
    %602 = vmatprep.mubr.bf16.mxu0 0
    %603 = vmatmul.mubr.bf16.gmra.mrb[0].mxu0 %v512
    %v604 = vpop.f32.mrb[0].mxu0
    %v605 = vadd.f32 0.0, %v604
    %v606 = vpop.f32.mrb[0].mxu0
    %v607 = vpop.f32.mrb[0].mxu0
    %v608 = vadd.f32 0.0, %v607
    %v609 = vpop.f32.mrb[0].mxu0
    %610 = vmatprep.mubr.bf16.mxu0 0
    %611 = vmatmul.mubr.bf16.gmra.mrb[0].mxu0 %v513
    %v612 = vpop.f32.mrb[0].mxu0
    %v613 = vadd.f32 0.0, %v612
    %v614 = vpop.f32.mrb[0].mxu0
    %v615 = vpop.f32.mrb[0].mxu0
    %v616 = vadd.f32 0.0, %v615
    %v617 = vpop.f32.mrb[0].mxu0
    %618 = vdwg.mxu0
    %v635 = vunpack.c.l.b16 %v104
    %v636 = vunpack.c.l.b16 %v105
    %v637 = vunpack.c.l.b16 %v106
    %v638 = vunpack.c.l.b16 %v107
    %v639 = vunpack.c.l.b16 %v108
    %v640 = vunpack.c.l.b16 %v109
    %v641 = vunpack.c.l.b16 %v110
    %v642 = vunpack.c.l.b16 %v111
    %v643 = vunpack.c.l.b16 %v112
    %v644 = vunpack.c.l.b16 %v113
    %v645 = vunpack.c.l.b16 %v114
    %v646 = vunpack.c.l.b16 %v115
    %v647 = vunpack.c.l.b16 %v116
    %v648 = vunpack.c.l.b16 %v117
    %v649 = vunpack.c.l.b16 %v118
    %v650 = vunpack.c.l.b16 %v119
    %v651 = vpack.c.b16 %v636, %v635
    %v652 = vpack.c.b16 %v638, %v637
    %v653 = vpack.c.b16 %v640, %v639
    %v654 = vpack.c.b16 %v642, %v641
    %v655 = vpack.c.b16 %v644, %v643
    %v656 = vpack.c.b16 %v646, %v645
    %v657 = vpack.c.b16 %v648, %v647
    %v658 = vpack.c.b16 %v650, %v649
    %667 = vmatprep.subr.bf16.mxu0 0
    %668 = vmatpush1.bf16.msra.mxu0 %v466
    %669 = vmatprep.subr.bf16.mxu0 0
    %670 = vmatpush1.bf16.msra.mxu0 %v467
    %671 = vmatprep.subr.bf16.mxu0 0
    %672 = vmatpush1.bf16.msra.mxu0 %v468
    %673 = vmatprep.subr.bf16.mxu0 0
    %674 = vmatpush1.bf16.msra.mxu0 %v469
    %675 = vmatprep.subr.bf16.mxu0 0
    %676 = vmatpush1.bf16.msra.mxu0 %v470
    %677 = vmatprep.subr.bf16.mxu0 0
    %678 = vmatpush1.bf16.msra.mxu0 %v471
    %679 = vmatprep.subr.bf16.mxu0 0
    %680 = vmatpush1.bf16.msra.mxu0 %v472
    %681 = vmatprep.subr.bf16.mxu0 0
    %682 = vmatpush1.bf16.msra.mxu0 %v473
    %683 = vmatprep.subr.bf16.mxu0 0
    %684 = vmatpush1.bf16.msra.mxu0 0
    %685 = vmatprep.subr.bf16.mxu0 0
    %686 = vmatpush1.bf16.msra.mxu0 0
    %687 = vmatprep.subr.bf16.mxu0 0
    %688 = vmatpush1.bf16.msra.mxu0 0
    %689 = vmatprep.subr.bf16.mxu0 0
    %690 = vmatpush1.bf16.msra.mxu0 0
    %691 = vmatprep.subr.bf16.mxu0 0
    %692 = vmatpush1.bf16.msra.mxu0 0
    %693 = vmatprep.subr.bf16.mxu0 0
    %694 = vmatpush1.bf16.msra.mxu0 0
    %695 = vmatprep.subr.bf16.mxu0 0
    %696 = vmatpush1.bf16.msra.mxu0 0
    %697 = vmatprep.subr.bf16.mxu0 0
    %698 = vmatpush1.bf16.msra.mxu0 0
    %699 = vmatprep.mubr.bf16.mxu0 0
    %700 = vmatmul.mubr.bf16.gmra.mrb[0].mxu0 %v651
    %v701 = vpop.f32.mrb[0].mxu0
    %v702 = vadd.f32 0.0, %v701
    %v703 = vpop.f32.mrb[0].mxu0
    %v704 = vpop.f32.mrb[0].mxu0
    %v705 = vadd.f32 0.0, %v704
    %v706 = vpop.f32.mrb[0].mxu0
    %707 = vmatprep.mubr.bf16.mxu0 0
    %708 = vmatmul.mubr.bf16.gmra.mrb[0].mxu0 %v652
    %v709 = vpop.f32.mrb[0].mxu0
    %v710 = vadd.f32 0.0, %v709
    %v711 = vpop.f32.mrb[0].mxu0
    %v712 = vpop.f32.mrb[0].mxu0
    %v713 = vadd.f32 0.0, %v712
    %v714 = vpop.f32.mrb[0].mxu0
    %715 = vmatprep.mubr.bf16.mxu0 0
    %716 = vmatmul.mubr.bf16.gmra.mrb[0].mxu0 %v653
    %v717 = vpop.f32.mrb[0].mxu0
    %v718 = vadd.f32 0.0, %v717
    %v719 = vpop.f32.mrb[0].mxu0
    %v720 = vpop.f32.mrb[0].mxu0
    %v721 = vadd.f32 0.0, %v720
    %v722 = vpop.f32.mrb[0].mxu0
    %723 = vmatprep.mubr.bf16.mxu0 0
    %724 = vmatmul.mubr.bf16.gmra.mrb[0].mxu0 %v654
    %v725 = vpop.f32.mrb[0].mxu0
    %v726 = vadd.f32 0.0, %v725
    %v727 = vpop.f32.mrb[0].mxu0
    %v728 = vpop.f32.mrb[0].mxu0
    %v729 = vadd.f32 0.0, %v728
    %v730 = vpop.f32.mrb[0].mxu0
    %731 = vmatprep.mubr.bf16.mxu0 0
    %732 = vmatmul.mubr.bf16.gmra.mrb[0].mxu0 %v655
    %v733 = vpop.f32.mrb[0].mxu0
    %v734 = vadd.f32 0.0, %v733
    %v735 = vpop.f32.mrb[0].mxu0
    %v736 = vpop.f32.mrb[0].mxu0
    %v737 = vadd.f32 0.0, %v736
    %v738 = vpop.f32.mrb[0].mxu0
    %739 = vmatprep.mubr.bf16.mxu0 0
    %740 = vmatmul.mubr.bf16.gmra.mrb[0].mxu0 %v656
    %v741 = vpop.f32.mrb[0].mxu0
    %v742 = vadd.f32 0.0, %v741
    %v743 = vpop.f32.mrb[0].mxu0
    %v744 = vpop.f32.mrb[0].mxu0
    %v745 = vadd.f32 0.0, %v744
    %v746 = vpop.f32.mrb[0].mxu0
    %747 = vmatprep.mubr.bf16.mxu0 0
    %748 = vmatmul.mubr.bf16.gmra.mrb[0].mxu0 %v657
    %v749 = vpop.f32.mrb[0].mxu0
    %v750 = vadd.f32 0.0, %v749
    %v751 = vpop.f32.mrb[0].mxu0
    %v752 = vpop.f32.mrb[0].mxu0
    %v753 = vadd.f32 0.0, %v752
    %v754 = vpop.f32.mrb[0].mxu0
    %755 = vmatprep.mubr.bf16.mxu0 0
    %756 = vmatmul.mubr.bf16.gmra.mrb[0].mxu0 %v658
    %v757 = vpop.f32.mrb[0].mxu0
    %v758 = vadd.f32 0.0, %v757
    %v759 = vpop.f32.mrb[0].mxu0
    %v760 = vpop.f32.mrb[0].mxu0
    %v761 = vadd.f32 0.0, %v760
    %v762 = vpop.f32.mrb[0].mxu0
    %763 = vdwg.mxu0
    %v764 = vmax.f32 %v557, 0.0
    %v765 = vmax.f32 %v560, 0.0
    %v766 = vmax.f32 %v565, 0.0
    %v767 = vmax.f32 %v568, 0.0
    %v768 = vmax.f32 %v573, 0.0
    %v769 = vmax.f32 %v576, 0.0
    %v770 = vmax.f32 %v581, 0.0
    %v771 = vmax.f32 %v584, 0.0
    %v772 = vmax.f32 %v589, 0.0
    %v773 = vmax.f32 %v592, 0.0
    %v774 = vmax.f32 %v597, 0.0
    %v775 = vmax.f32 %v600, 0.0
    %v776 = vmax.f32 %v605, 0.0
    %v777 = vmax.f32 %v608, 0.0
    %v778 = vmax.f32 %v613, 0.0
    %v779 = vmax.f32 %v616, 0.0
    %v780 = vmax.f32 %v702, 0.0
    %v781 = vmax.f32 %v705, 0.0
    %v782 = vmax.f32 %v710, 0.0
    %v783 = vmax.f32 %v713, 0.0
    %v784 = vmax.f32 %v718, 0.0
    %v785 = vmax.f32 %v721, 0.0
    %v786 = vmax.f32 %v726, 0.0
    %v787 = vmax.f32 %v729, 0.0
    %v788 = vmax.f32 %v734, 0.0
    %v789 = vmax.f32 %v737, 0.0
    %v790 = vmax.f32 %v742, 0.0
    %v791 = vmax.f32 %v745, 0.0
    %v792 = vmax.f32 %v750, 0.0
    %v793 = vmax.f32 %v753, 0.0
    %v794 = vmax.f32 %v758, 0.0
    %v795 = vmax.f32 %v761, 0.0
    %v796 = vpack.c.bf16 %v765, %v764
    %v797 = vpack.c.bf16 %v767, %v766
    %v798 = vpack.c.bf16 %v769, %v768
    %v799 = vpack.c.bf16 %v771, %v770
    %v800 = vpack.c.bf16 %v773, %v772
    %v801 = vpack.c.bf16 %v775, %v774
    %v802 = vpack.c.bf16 %v777, %v776
    %v803 = vpack.c.bf16 %v779, %v778
    %v804 = vpack.c.bf16 %v781, %v780
    %v805 = vpack.c.bf16 %v783, %v782
    %v806 = vpack.c.bf16 %v785, %v784
    %v807 = vpack.c.bf16 %v787, %v786
    %v808 = vpack.c.bf16 %v789, %v788
    %v809 = vpack.c.bf16 %v791, %v790
    %v810 = vpack.c.bf16 %v793, %v792
    %v811 = vpack.c.bf16 %v795, %v794
    %812 = vmatprep.subr.bf16.mxu0 0
    %813 = vmatpush1.bf16.msra.mxu0 %v796
    %814 = vmatprep.subr.bf16.mxu0 0
    %815 = vmatpush1.bf16.msra.mxu0 %v797
    %816 = vmatprep.subr.bf16.mxu0 0
    %817 = vmatpush1.bf16.msra.mxu0 %v798
    %818 = vmatprep.subr.bf16.mxu0 0
    %819 = vmatpush1.bf16.msra.mxu0 %v799
    %820 = vmatprep.subr.bf16.mxu0 0
    %821 = vmatpush1.bf16.msra.mxu0 %v800
    %822 = vmatprep.subr.bf16.mxu0 0
    %823 = vmatpush1.bf16.msra.mxu0 %v801
    %824 = vmatprep.subr.bf16.mxu0 0
    %825 = vmatpush1.bf16.msra.mxu0 %v802
    %826 = vmatprep.subr.bf16.mxu0 0
    %827 = vmatpush1.bf16.msra.mxu0 %v803
    %828 = vmatprep.subr.bf16.mxu0 0
    %829 = vmatpush1.bf16.msra.mxu0 0
    %830 = vmatprep.subr.bf16.mxu0 0
    %831 = vmatpush1.bf16.msra.mxu0 0
    %832 = vmatprep.subr.bf16.mxu0 0
    %833 = vmatpush1.bf16.msra.mxu0 0
    %834 = vmatprep.subr.bf16.mxu0 0
    %835 = vmatpush1.bf16.msra.mxu0 0
    %836 = vmatprep.subr.bf16.mxu0 0
    %837 = vmatpush1.bf16.msra.mxu0 0
    %838 = vmatprep.subr.bf16.mxu0 0
    %839 = vmatpush1.bf16.msra.mxu0 0
    %840 = vmatprep.subr.bf16.mxu0 0
    %841 = vmatpush1.bf16.msra.mxu0 0
    %842 = vmatprep.subr.bf16.mxu0 0
    %843 = vmatpush1.bf16.msra.mxu0 0
    %844 = vmatprep.mubr.bf16.mxu0 0
    %845 = vmatmul.mubr.bf16.gmra.mrb[0].mxu0 %v506
    %v846 = vpop.f32.mrb[0].mxu0
    %v847 = vadd.f32 0.0, %v846
    %v848 = vpop.f32.mrb[0].mxu0
    %v849 = vpop.f32.mrb[0].mxu0
    %v850 = vadd.f32 0.0, %v849
    %v851 = vpop.f32.mrb[0].mxu0
    %852 = vmatprep.mubr.bf16.mxu0 0
    %853 = vmatmul.mubr.bf16.gmra.mrb[0].mxu0 %v507
    %v854 = vpop.f32.mrb[0].mxu0
    %v855 = vadd.f32 0.0, %v854
    %v856 = vpop.f32.mrb[0].mxu0
    %v857 = vpop.f32.mrb[0].mxu0
    %v858 = vadd.f32 0.0, %v857
    %v859 = vpop.f32.mrb[0].mxu0
    %860 = vmatprep.mubr.bf16.mxu0 0
    %861 = vmatmul.mubr.bf16.gmra.mrb[0].mxu0 %v508
    %v862 = vpop.f32.mrb[0].mxu0
    %v863 = vadd.f32 0.0, %v862
    %v864 = vpop.f32.mrb[0].mxu0
    %v865 = vpop.f32.mrb[0].mxu0
    %v866 = vadd.f32 0.0, %v865
    %v867 = vpop.f32.mrb[0].mxu0
    %868 = vmatprep.mubr.bf16.mxu0 0
    %869 = vmatmul.mubr.bf16.gmra.mrb[0].mxu0 %v509
    %v870 = vpop.f32.mrb[0].mxu0
    %v871 = vadd.f32 0.0, %v870
    %v872 = vpop.f32.mrb[0].mxu0
    %v873 = vpop.f32.mrb[0].mxu0
    %v874 = vadd.f32 0.0, %v873
    %v875 = vpop.f32.mrb[0].mxu0
    %876 = vmatprep.mubr.bf16.mxu0 0
    %877 = vmatmul.mubr.bf16.gmra.mrb[0].mxu0 %v510
    %v878 = vpop.f32.mrb[0].mxu0
    %v879 = vadd.f32 0.0, %v878
    %v880 = vpop.f32.mrb[0].mxu0
    %v881 = vpop.f32.mrb[0].mxu0
    %v882 = vadd.f32 0.0, %v881
    %v883 = vpop.f32.mrb[0].mxu0
    %884 = vmatprep.mubr.bf16.mxu0 0
    %885 = vmatmul.mubr.bf16.gmra.mrb[0].mxu0 %v511
    %v886 = vpop.f32.mrb[0].mxu0
    %v887 = vadd.f32 0.0, %v886
    %v888 = vpop.f32.mrb[0].mxu0
    %v889 = vpop.f32.mrb[0].mxu0
    %v890 = vadd.f32 0.0, %v889
    %v891 = vpop.f32.mrb[0].mxu0
    %892 = vmatprep.mubr.bf16.mxu0 0
    %893 = vmatmul.mubr.bf16.gmra.mrb[0].mxu0 %v512
    %v894 = vpop.f32.mrb[0].mxu0
    %v895 = vadd.f32 0.0, %v894
    %v896 = vpop.f32.mrb[0].mxu0
    %v897 = vpop.f32.mrb[0].mxu0
    %v898 = vadd.f32 0.0, %v897
    %v899 = vpop.f32.mrb[0].mxu0
    %900 = vmatprep.mubr.bf16.mxu0 0
    %901 = vmatmul.mubr.bf16.gmra.mrb[0].mxu0 %v513
    %v902 = vpop.f32.mrb[0].mxu0
    %v903 = vadd.f32 0.0, %v902
    %v904 = vpop.f32.mrb[0].mxu0
    %v905 = vpop.f32.mrb[0].mxu0
    %v906 = vadd.f32 0.0, %v905
    %v907 = vpop.f32.mrb[0].mxu0
    %908 = vdwg.mxu0
    %909 = vmatprep.subr.bf16.mxu0 0
    %910 = vmatpush1.bf16.msra.mxu0 %v804
    %911 = vmatprep.subr.bf16.mxu0 0
    %912 = vmatpush1.bf16.msra.mxu0 %v805
    %913 = vmatprep.subr.bf16.mxu0 0
    %914 = vmatpush1.bf16.msra.mxu0 %v806
    %915 = vmatprep.subr.bf16.mxu0 0
    %916 = vmatpush1.bf16.msra.mxu0 %v807
    %917 = vmatprep.subr.bf16.mxu0 0
    %918 = vmatpush1.bf16.msra.mxu0 %v808
    %919 = vmatprep.subr.bf16.mxu0 0
    %920 = vmatpush1.bf16.msra.mxu0 %v809
    %921 = vmatprep.subr.bf16.mxu0 0
    %922 = vmatpush1.bf16.msra.mxu0 %v810
    %923 = vmatprep.subr.bf16.mxu0 0
    %924 = vmatpush1.bf16.msra.mxu0 %v811
    %925 = vmatprep.subr.bf16.mxu0 0
    %926 = vmatpush1.bf16.msra.mxu0 0
    %927 = vmatprep.subr.bf16.mxu0 0
    %928 = vmatpush1.bf16.msra.mxu0 0
    %929 = vmatprep.subr.bf16.mxu0 0
    %930 = vmatpush1.bf16.msra.mxu0 0
    %931 = vmatprep.subr.bf16.mxu0 0
    %932 = vmatpush1.bf16.msra.mxu0 0
    %933 = vmatprep.subr.bf16.mxu0 0
    %934 = vmatpush1.bf16.msra.mxu0 0
    %935 = vmatprep.subr.bf16.mxu0 0
    %936 = vmatpush1.bf16.msra.mxu0 0
    %937 = vmatprep.subr.bf16.mxu0 0
    %938 = vmatpush1.bf16.msra.mxu0 0
    %939 = vmatprep.subr.bf16.mxu0 0
    %940 = vmatpush1.bf16.msra.mxu0 0
    %941 = vmatprep.mubr.bf16.mxu0 0
    %942 = vmatmul.mubr.bf16.gmra.mrb[0].mxu0 %v651
    %v943 = vpop.f32.mrb[0].mxu0
    %v944 = vadd.f32 0.0, %v943
    %v945 = vpop.f32.mrb[0].mxu0
    %v946 = vpop.f32.mrb[0].mxu0
    %v947 = vadd.f32 0.0, %v946
    %v948 = vpop.f32.mrb[0].mxu0
    %949 = vmatprep.mubr.bf16.mxu0 0
    %950 = vmatmul.mubr.bf16.gmra.mrb[0].mxu0 %v652
    %v951 = vpop.f32.mrb[0].mxu0
    %v952 = vadd.f32 0.0, %v951
    %v953 = vpop.f32.mrb[0].mxu0
    %v954 = vpop.f32.mrb[0].mxu0
    %v955 = vadd.f32 0.0, %v954
    %v956 = vpop.f32.mrb[0].mxu0
    %957 = vmatprep.mubr.bf16.mxu0 0
    %958 = vmatmul.mubr.bf16.gmra.mrb[0].mxu0 %v653
    %v959 = vpop.f32.mrb[0].mxu0
    %v960 = vadd.f32 0.0, %v959
    %v961 = vpop.f32.mrb[0].mxu0
    %v962 = vpop.f32.mrb[0].mxu0
    %v963 = vadd.f32 0.0, %v962
    %v964 = vpop.f32.mrb[0].mxu0
    %965 = vmatprep.mubr.bf16.mxu0 0
    %966 = vmatmul.mubr.bf16.gmra.mrb[0].mxu0 %v654
    %v967 = vpop.f32.mrb[0].mxu0
    %v968 = vadd.f32 0.0, %v967
    %v969 = vpop.f32.mrb[0].mxu0
    %v970 = vpop.f32.mrb[0].mxu0
    %v971 = vadd.f32 0.0, %v970
    %v972 = vpop.f32.mrb[0].mxu0
    %973 = vmatprep.mubr.bf16.mxu0 0
    %974 = vmatmul.mubr.bf16.gmra.mrb[0].mxu0 %v655
    %v975 = vpop.f32.mrb[0].mxu0
    %v976 = vadd.f32 0.0, %v975
    %v977 = vpop.f32.mrb[0].mxu0
    %v978 = vpop.f32.mrb[0].mxu0
    %v979 = vadd.f32 0.0, %v978
    %v980 = vpop.f32.mrb[0].mxu0
    %981 = vmatprep.mubr.bf16.mxu0 0
    %982 = vmatmul.mubr.bf16.gmra.mrb[0].mxu0 %v656
    %v983 = vpop.f32.mrb[0].mxu0
    %v984 = vadd.f32 0.0, %v983
    %v985 = vpop.f32.mrb[0].mxu0
    %v986 = vpop.f32.mrb[0].mxu0
    %v987 = vadd.f32 0.0, %v986
    %v988 = vpop.f32.mrb[0].mxu0
    %989 = vmatprep.mubr.bf16.mxu0 0
    %990 = vmatmul.mubr.bf16.gmra.mrb[0].mxu0 %v657
    %v991 = vpop.f32.mrb[0].mxu0
    %v992 = vadd.f32 0.0, %v991
    %v993 = vpop.f32.mrb[0].mxu0
    %v994 = vpop.f32.mrb[0].mxu0
    %v995 = vadd.f32 0.0, %v994
    %v996 = vpop.f32.mrb[0].mxu0
    %997 = vmatprep.mubr.bf16.mxu0 0
    %998 = vmatmul.mubr.bf16.gmra.mrb[0].mxu0 %v658
    %v999 = vpop.f32.mrb[0].mxu0
    %v1000 = vadd.f32 0.0, %v999
    %v1001 = vpop.f32.mrb[0].mxu0
    %v1002 = vpop.f32.mrb[0].mxu0
    %v1003 = vadd.f32 0.0, %v1002
    %v1004 = vpop.f32.mrb[0].mxu0
    %1005 = vdwg.mxu0
    %v1006 = vpack.c.bf16 %v850, %v847
    %v1007 = vpack.c.bf16 %v858, %v855
    %v1008 = vpack.c.bf16 %v866, %v863
    %v1009 = vpack.c.bf16 %v874, %v871
    %v1010 = vpack.c.bf16 %v882, %v879
    %v1011 = vpack.c.bf16 %v890, %v887
    %v1012 = vpack.c.bf16 %v898, %v895
    %v1013 = vpack.c.bf16 %v906, %v903
    %v1014 = vpack.c.bf16 %v947, %v944
    %v1015 = vpack.c.bf16 %v955, %v952
    %v1016 = vpack.c.bf16 %v963, %v960
    %v1017 = vpack.c.bf16 %v971, %v968
    %v1018 = vpack.c.bf16 %v979, %v976
    %v1019 = vpack.c.bf16 %v987, %v984
    %v1020 = vpack.c.bf16 %v995, %v992
    %v1021 = vpack.c.bf16 %v1003, %v1000
    %v1022 = vld [vmem:[#allocation2] sm:$0xf]
    %v1023 = vld [vmem:[#allocation2 + $0x4] sm:$0xf]
    %v1024 = vld [vmem:[#allocation2 + $0x8] sm:$0xf]
    %v1025 = vld [vmem:[#allocation2 + $0xc] sm:$0xf]
    %v1026 = vld [vmem:[#allocation2 + $0x10] sm:$0xf]
    %v1027 = vld [vmem:[#allocation2 + $0x14] sm:$0xf]
    %v1028 = vld [vmem:[#allocation2 + $0x18] sm:$0xf]
    %v1029 = vld [vmem:[#allocation2 + $0x1c] sm:$0xf]
    %v1030 = vld [vmem:[#allocation2 + $0x20] sm:$0xf]
    %v1031 = vld [vmem:[#allocation2 + $0x24] sm:$0xf]
    %v1032 = vld [vmem:[#allocation2 + $0x28] sm:$0xf]
    %v1033 = vld [vmem:[#allocation2 + $0x2c] sm:$0xf]
    %v1034 = vld [vmem:[#allocation2 + $0x30] sm:$0xf]
    %v1035 = vld [vmem:[#allocation2 + $0x34] sm:$0xf]
    %v1036 = vld [vmem:[#allocation2 + $0x38] sm:$0xf]
    %v1037 = vld [vmem:[#allocation2 + $0x3c] sm:$0xf]
    %v1054 = vunpack.c.l.b16 %v1022
    %v1055 = vunpack.c.l.b16 %v1023
    %v1056 = vunpack.c.l.b16 %v1024
    %v1057 = vunpack.c.l.b16 %v1025
    %v1058 = vunpack.c.l.b16 %v1026
    %v1059 = vunpack.c.l.b16 %v1027
    %v1060 = vunpack.c.l.b16 %v1028
    %v1061 = vunpack.c.l.b16 %v1029
    %v1062 = vunpack.c.l.b16 %v1030
    %v1063 = vunpack.c.l.b16 %v1031
    %v1064 = vunpack.c.l.b16 %v1032
    %v1065 = vunpack.c.l.b16 %v1033
    %v1066 = vunpack.c.l.b16 %v1034
    %v1067 = vunpack.c.l.b16 %v1035
    %v1068 = vunpack.c.l.b16 %v1036
    %v1069 = vunpack.c.l.b16 %v1037
    %v1070 = vpack.c.b16 %v1055, %v1054
    %v1071 = vpack.c.b16 %v1057, %v1056
    %v1072 = vpack.c.b16 %v1059, %v1058
    %v1073 = vpack.c.b16 %v1061, %v1060
    %v1074 = vpack.c.b16 %v1063, %v1062
    %v1075 = vpack.c.b16 %v1065, %v1064
    %v1076 = vpack.c.b16 %v1067, %v1066
    %v1077 = vpack.c.b16 %v1069, %v1068
    %1086 = vmatprep.subr.bf16.mxu0 0
    %1087 = vmatpush1.bf16.msra.mxu0 %v1070
    %1088 = vmatprep.subr.bf16.mxu0 0
    %1089 = vmatpush1.bf16.msra.mxu0 %v1071
    %1090 = vmatprep.subr.bf16.mxu0 0
    %1091 = vmatpush1.bf16.msra.mxu0 %v1072
    %1092 = vmatprep.subr.bf16.mxu0 0
    %1093 = vmatpush1.bf16.msra.mxu0 %v1073
    %1094 = vmatprep.subr.bf16.mxu0 0
    %1095 = vmatpush1.bf16.msra.mxu0 %v1074
    %1096 = vmatprep.subr.bf16.mxu0 0
    %1097 = vmatpush1.bf16.msra.mxu0 %v1075
    %1098 = vmatprep.subr.bf16.mxu0 0
    %1099 = vmatpush1.bf16.msra.mxu0 %v1076
    %1100 = vmatprep.subr.bf16.mxu0 0
    %1101 = vmatpush1.bf16.msra.mxu0 %v1077
    %1102 = vmatprep.subr.bf16.mxu0 0
    %1103 = vmatpush1.bf16.msra.mxu0 0
    %1104 = vmatprep.subr.bf16.mxu0 0
    %1105 = vmatpush1.bf16.msra.mxu0 0
    %1106 = vmatprep.subr.bf16.mxu0 0
    %1107 = vmatpush1.bf16.msra.mxu0 0
    %1108 = vmatprep.subr.bf16.mxu0 0
    %1109 = vmatpush1.bf16.msra.mxu0 0
    %1110 = vmatprep.subr.bf16.mxu0 0
    %1111 = vmatpush1.bf16.msra.mxu0 0
    %1112 = vmatprep.subr.bf16.mxu0 0
    %1113 = vmatpush1.bf16.msra.mxu0 0
    %1114 = vmatprep.subr.bf16.mxu0 0
    %1115 = vmatpush1.bf16.msra.mxu0 0
    %1116 = vmatprep.subr.bf16.mxu0 0
    %1117 = vmatpush1.bf16.msra.mxu0 0
    %1118 = vmatprep.mubr.bf16.mxu0 0
    %1119 = vmatmul.mubr.bf16.gmra.mrb[0].mxu0 %v1006
    %v1120 = vpop.f32.mrb[0].mxu0
    %v1121 = vadd.f32 0.0, %v1120
    %v1122 = vpop.f32.mrb[0].mxu0
    %v1123 = vpop.f32.mrb[0].mxu0
    %v1124 = vadd.f32 0.0, %v1123
    %v1125 = vpop.f32.mrb[0].mxu0
    %1126 = vmatprep.mubr.bf16.mxu0 0
    %1127 = vmatmul.mubr.bf16.gmra.mrb[0].mxu0 %v1007
    %v1128 = vpop.f32.mrb[0].mxu0
    %v1129 = vadd.f32 0.0, %v1128
    %v1130 = vpop.f32.mrb[0].mxu0
    %v1131 = vpop.f32.mrb[0].mxu0
    %v1132 = vadd.f32 0.0, %v1131
    %v1133 = vpop.f32.mrb[0].mxu0
    %1134 = vmatprep.mubr.bf16.mxu0 0
    %1135 = vmatmul.mubr.bf16.gmra.mrb[0].mxu0 %v1008
    %v1136 = vpop.f32.mrb[0].mxu0
    %v1137 = vadd.f32 0.0, %v1136
    %v1138 = vpop.f32.mrb[0].mxu0
    %v1139 = vpop.f32.mrb[0].mxu0
    %v1140 = vadd.f32 0.0, %v1139
    %v1141 = vpop.f32.mrb[0].mxu0
    %1142 = vmatprep.mubr.bf16.mxu0 0
    %1143 = vmatmul.mubr.bf16.gmra.mrb[0].mxu0 %v1009
    %v1144 = vpop.f32.mrb[0].mxu0
    %v1145 = vadd.f32 0.0, %v1144
    %v1146 = vpop.f32.mrb[0].mxu0
    %v1147 = vpop.f32.mrb[0].mxu0
    %v1148 = vadd.f32 0.0, %v1147
    %v1149 = vpop.f32.mrb[0].mxu0
    %1150 = vmatprep.mubr.bf16.mxu0 0
    %1151 = vmatmul.mubr.bf16.gmra.mrb[0].mxu0 %v1010
    %v1152 = vpop.f32.mrb[0].mxu0
    %v1153 = vadd.f32 0.0, %v1152
    %v1154 = vpop.f32.mrb[0].mxu0
    %v1155 = vpop.f32.mrb[0].mxu0
    %v1156 = vadd.f32 0.0, %v1155
    %v1157 = vpop.f32.mrb[0].mxu0
    %1158 = vmatprep.mubr.bf16.mxu0 0
    %1159 = vmatmul.mubr.bf16.gmra.mrb[0].mxu0 %v1011
    %v1160 = vpop.f32.mrb[0].mxu0
    %v1161 = vadd.f32 0.0, %v1160
    %v1162 = vpop.f32.mrb[0].mxu0
    %v1163 = vpop.f32.mrb[0].mxu0
    %v1164 = vadd.f32 0.0, %v1163
    %v1165 = vpop.f32.mrb[0].mxu0
    %1166 = vmatprep.mubr.bf16.mxu0 0
    %1167 = vmatmul.mubr.bf16.gmra.mrb[0].mxu0 %v1012
    %v1168 = vpop.f32.mrb[0].mxu0
    %v1169 = vadd.f32 0.0, %v1168
    %v1170 = vpop.f32.mrb[0].mxu0
    %v1171 = vpop.f32.mrb[0].mxu0
    %v1172 = vadd.f32 0.0, %v1171
    %v1173 = vpop.f32.mrb[0].mxu0
    %1174 = vmatprep.mubr.bf16.mxu0 0
    %1175 = vmatmul.mubr.bf16.gmra.mrb[0].mxu0 %v1013
    %v1176 = vpop.f32.mrb[0].mxu0
    %v1177 = vadd.f32 0.0, %v1176
    %v1178 = vpop.f32.mrb[0].mxu0
    %v1179 = vpop.f32.mrb[0].mxu0
    %v1180 = vadd.f32 0.0, %v1179
    %v1181 = vpop.f32.mrb[0].mxu0
    %1182 = vmatprep.mubr.bf16.mxu0 0
    %1183 = vmatmul.mubr.bf16.gmra.mrb[0].mxu0 %v1014
    %v1184 = vpop.f32.mrb[0].mxu0
    %v1185 = vadd.f32 0.0, %v1184
    %v1186 = vpop.f32.mrb[0].mxu0
    %v1187 = vpop.f32.mrb[0].mxu0
    %v1188 = vadd.f32 0.0, %v1187
    %v1189 = vpop.f32.mrb[0].mxu0
    %1190 = vmatprep.mubr.bf16.mxu0 0
    %1191 = vmatmul.mubr.bf16.gmra.mrb[0].mxu0 %v1015
    %v1192 = vpop.f32.mrb[0].mxu0
    %v1193 = vadd.f32 0.0, %v1192
    %v1194 = vpop.f32.mrb[0].mxu0
    %v1195 = vpop.f32.mrb[0].mxu0
    %v1196 = vadd.f32 0.0, %v1195
    %v1197 = vpop.f32.mrb[0].mxu0
    %1198 = vmatprep.mubr.bf16.mxu0 0
    %1199 = vmatmul.mubr.bf16.gmra.mrb[0].mxu0 %v1016
    %v1200 = vpop.f32.mrb[0].mxu0
    %v1201 = vadd.f32 0.0, %v1200
    %v1202 = vpop.f32.mrb[0].mxu0
    %v1203 = vpop.f32.mrb[0].mxu0
    %v1204 = vadd.f32 0.0, %v1203
    %v1205 = vpop.f32.mrb[0].mxu0
    %1206 = vmatprep.mubr.bf16.mxu0 0
    %1207 = vmatmul.mubr.bf16.gmra.mrb[0].mxu0 %v1017
    %v1208 = vpop.f32.mrb[0].mxu0
    %v1209 = vadd.f32 0.0, %v1208
    %v1210 = vpop.f32.mrb[0].mxu0
    %v1211 = vpop.f32.mrb[0].mxu0
    %v1212 = vadd.f32 0.0, %v1211
    %v1213 = vpop.f32.mrb[0].mxu0
    %1214 = vmatprep.mubr.bf16.mxu0 0
    %1215 = vmatmul.mubr.bf16.gmra.mrb[0].mxu0 %v1018
    %v1216 = vpop.f32.mrb[0].mxu0
    %v1217 = vadd.f32 0.0, %v1216
    %v1218 = vpop.f32.mrb[0].mxu0
    %v1219 = vpop.f32.mrb[0].mxu0
    %v1220 = vadd.f32 0.0, %v1219
    %v1221 = vpop.f32.mrb[0].mxu0
    %1222 = vmatprep.mubr.bf16.mxu0 0
    %1223 = vmatmul.mubr.bf16.gmra.mrb[0].mxu0 %v1019
    %v1224 = vpop.f32.mrb[0].mxu0
    %v1225 = vadd.f32 0.0, %v1224
    %v1226 = vpop.f32.mrb[0].mxu0
    %v1227 = vpop.f32.mrb[0].mxu0
    %v1228 = vadd.f32 0.0, %v1227
    %v1229 = vpop.f32.mrb[0].mxu0
    %1230 = vmatprep.mubr.bf16.mxu0 0
    %1231 = vmatmul.mubr.bf16.gmra.mrb[0].mxu0 %v1020
    %v1232 = vpop.f32.mrb[0].mxu0
    %v1233 = vadd.f32 0.0, %v1232
    %v1234 = vpop.f32.mrb[0].mxu0
    %v1235 = vpop.f32.mrb[0].mxu0
    %v1236 = vadd.f32 0.0, %v1235
    %v1237 = vpop.f32.mrb[0].mxu0
    %1238 = vmatprep.mubr.bf16.mxu0 0
    %1239 = vmatmul.mubr.bf16.gmra.mrb[0].mxu0 %v1021
    %v1240 = vpop.f32.mrb[0].mxu0
    %v1241 = vadd.f32 0.0, %v1240
    %v1242 = vpop.f32.mrb[0].mxu0
    %v1243 = vpop.f32.mrb[0].mxu0
    %v1244 = vadd.f32 0.0, %v1243
    %v1245 = vpop.f32.mrb[0].mxu0
    %1246 = vdwg.mxu0
    %v1247 = vmax.f32 %v1121, 0.0
    %v1248 = vmax.f32 %v1124, 0.0
    %v1249 = vmax.f32 %v1129, 0.0
    %v1250 = vmax.f32 %v1132, 0.0
    %v1251 = vmax.f32 %v1137, 0.0
    %v1252 = vmax.f32 %v1140, 0.0
    %v1253 = vmax.f32 %v1145, 0.0
    %v1254 = vmax.f32 %v1148, 0.0
    %v1255 = vmax.f32 %v1153, 0.0
    %v1256 = vmax.f32 %v1156, 0.0
    %v1257 = vmax.f32 %v1161, 0.0
    %v1258 = vmax.f32 %v1164, 0.0
    %v1259 = vmax.f32 %v1169, 0.0
    %v1260 = vmax.f32 %v1172, 0.0
    %v1261 = vmax.f32 %v1177, 0.0
    %v1262 = vmax.f32 %v1180, 0.0
    %v1263 = vmax.f32 %v1185, 0.0
    %v1264 = vmax.f32 %v1188, 0.0
    %v1265 = vmax.f32 %v1193, 0.0
    %v1266 = vmax.f32 %v1196, 0.0
    %v1267 = vmax.f32 %v1201, 0.0
    %v1268 = vmax.f32 %v1204, 0.0
    %v1269 = vmax.f32 %v1209, 0.0
    %v1270 = vmax.f32 %v1212, 0.0
    %v1271 = vmax.f32 %v1217, 0.0
    %v1272 = vmax.f32 %v1220, 0.0
    %v1273 = vmax.f32 %v1225, 0.0
    %v1274 = vmax.f32 %v1228, 0.0
    %v1275 = vmax.f32 %v1233, 0.0
    %v1276 = vmax.f32 %v1236, 0.0
    %v1277 = vmax.f32 %v1241, 0.0
    %v1278 = vmax.f32 %v1244, 0.0
    %v1279 = vpack.c.bf16 %v1248, %v1247
    %v1280 = vpack.c.bf16 %v1250, %v1249
    %v1281 = vpack.c.bf16 %v1252, %v1251
    %v1282 = vpack.c.bf16 %v1254, %v1253
    %v1283 = vpack.c.bf16 %v1256, %v1255
    %v1284 = vpack.c.bf16 %v1258, %v1257
    %v1285 = vpack.c.bf16 %v1260, %v1259
    %v1286 = vpack.c.bf16 %v1262, %v1261
    %v1287 = vpack.c.bf16 %v1264, %v1263
    %v1288 = vpack.c.bf16 %v1266, %v1265
    %v1289 = vpack.c.bf16 %v1268, %v1267
    %v1290 = vpack.c.bf16 %v1270, %v1269
    %v1291 = vpack.c.bf16 %v1272, %v1271
    %v1292 = vpack.c.bf16 %v1274, %v1273
    %v1293 = vpack.c.bf16 %v1276, %v1275
    %v1294 = vpack.c.bf16 %v1278, %v1277
    %1295 = vmatprep.subr.bf16.mxu0 0
    %1296 = vmatpush1.bf16.msra.mxu0 %v1279
    %1297 = vmatprep.subr.bf16.mxu0 0
    %1298 = vmatpush1.bf16.msra.mxu0 %v1280
    %1299 = vmatprep.subr.bf16.mxu0 0
    %1300 = vmatpush1.bf16.msra.mxu0 %v1281
    %1301 = vmatprep.subr.bf16.mxu0 0
    %1302 = vmatpush1.bf16.msra.mxu0 %v1282
    %1303 = vmatprep.subr.bf16.mxu0 0
    %1304 = vmatpush1.bf16.msra.mxu0 %v1283
    %1305 = vmatprep.subr.bf16.mxu0 0
    %1306 = vmatpush1.bf16.msra.mxu0 %v1284
    %1307 = vmatprep.subr.bf16.mxu0 0
    %1308 = vmatpush1.bf16.msra.mxu0 %v1285
    %1309 = vmatprep.subr.bf16.mxu0 0
    %1310 = vmatpush1.bf16.msra.mxu0 %v1286
    %1311 = vmatprep.subr.bf16.mxu0 0
    %1312 = vmatpush1.bf16.msra.mxu0 0
    %1313 = vmatprep.subr.bf16.mxu0 0
    %1314 = vmatpush1.bf16.msra.mxu0 0
    %1315 = vmatprep.subr.bf16.mxu0 0
    %1316 = vmatpush1.bf16.msra.mxu0 0
    %1317 = vmatprep.subr.bf16.mxu0 0
    %1318 = vmatpush1.bf16.msra.mxu0 0
    %1319 = vmatprep.subr.bf16.mxu0 0
    %1320 = vmatpush1.bf16.msra.mxu0 0
    %1321 = vmatprep.subr.bf16.mxu0 0
    %1322 = vmatpush1.bf16.msra.mxu0 0
    %1323 = vmatprep.subr.bf16.mxu0 0
    %1324 = vmatpush1.bf16.msra.mxu0 0
    %1325 = vmatprep.subr.bf16.mxu0 0
    %1326 = vmatpush1.bf16.msra.mxu0 0
    %1327 = vmatprep.mubr.bf16.mxu0 0
    %1328 = vmatmul.mubr.bf16.gmra.mrb[0].mxu0 %v506
    %v1329 = vpop.f32.mrb[0].mxu0
    %v1330 = vadd.f32 0.0, %v1329
    %v1331 = vpop.f32.mrb[0].mxu0
    %v1332 = vpop.f32.mrb[0].mxu0
    %v1333 = vadd.f32 0.0, %v1332
    %v1334 = vpop.f32.mrb[0].mxu0
    %1335 = vmatprep.mubr.bf16.mxu0 0
    %1336 = vmatmul.mubr.bf16.gmra.mrb[0].mxu0 %v507
    %v1337 = vpop.f32.mrb[0].mxu0
    %v1338 = vadd.f32 0.0, %v1337
    %v1339 = vpop.f32.mrb[0].mxu0
    %v1340 = vpop.f32.mrb[0].mxu0
    %v1341 = vadd.f32 0.0, %v1340
    %v1342 = vpop.f32.mrb[0].mxu0
    %1343 = vmatprep.mubr.bf16.mxu0 0
    %1344 = vmatmul.mubr.bf16.gmra.mrb[0].mxu0 %v508
    %v1345 = vpop.f32.mrb[0].mxu0
    %v1346 = vadd.f32 0.0, %v1345
    %v1347 = vpop.f32.mrb[0].mxu0
    %v1348 = vpop.f32.mrb[0].mxu0
    %v1349 = vadd.f32 0.0, %v1348
    %v1350 = vpop.f32.mrb[0].mxu0
    %1351 = vmatprep.mubr.bf16.mxu0 0
    %1352 = vmatmul.mubr.bf16.gmra.mrb[0].mxu0 %v509
    %v1353 = vpop.f32.mrb[0].mxu0
    %v1354 = vadd.f32 0.0, %v1353
    %v1355 = vpop.f32.mrb[0].mxu0
    %v1356 = vpop.f32.mrb[0].mxu0
    %v1357 = vadd.f32 0.0, %v1356
    %v1358 = vpop.f32.mrb[0].mxu0
    %1359 = vmatprep.mubr.bf16.mxu0 0
    %1360 = vmatmul.mubr.bf16.gmra.mrb[0].mxu0 %v510
    %v1361 = vpop.f32.mrb[0].mxu0
    %v1362 = vadd.f32 0.0, %v1361
    %v1363 = vpop.f32.mrb[0].mxu0
    %v1364 = vpop.f32.mrb[0].mxu0
    %v1365 = vadd.f32 0.0, %v1364
    %v1366 = vpop.f32.mrb[0].mxu0
    %1367 = vmatprep.mubr.bf16.mxu0 0
    %1368 = vmatmul.mubr.bf16.gmra.mrb[0].mxu0 %v511
    %v1369 = vpop.f32.mrb[0].mxu0
    %v1370 = vadd.f32 0.0, %v1369
    %v1371 = vpop.f32.mrb[0].mxu0
    %v1372 = vpop.f32.mrb[0].mxu0
    %v1373 = vadd.f32 0.0, %v1372
    %v1374 = vpop.f32.mrb[0].mxu0
    %1375 = vmatprep.mubr.bf16.mxu0 0
    %1376 = vmatmul.mubr.bf16.gmra.mrb[0].mxu0 %v512
    %v1377 = vpop.f32.mrb[0].mxu0
    %v1378 = vadd.f32 0.0, %v1377
    %v1379 = vpop.f32.mrb[0].mxu0
    %v1380 = vpop.f32.mrb[0].mxu0
    %v1381 = vadd.f32 0.0, %v1380
    %v1382 = vpop.f32.mrb[0].mxu0
    %1383 = vmatprep.mubr.bf16.mxu0 0
    %1384 = vmatmul.mubr.bf16.gmra.mrb[0].mxu0 %v513
    %v1385 = vpop.f32.mrb[0].mxu0
    %v1386 = vadd.f32 0.0, %v1385
    %v1387 = vpop.f32.mrb[0].mxu0
    %v1388 = vpop.f32.mrb[0].mxu0
    %v1389 = vadd.f32 0.0, %v1388
    %v1390 = vpop.f32.mrb[0].mxu0
    %1391 = vdwg.mxu0
    %1392 = vmatprep.subr.bf16.mxu0 0
    %1393 = vmatpush1.bf16.msra.mxu0 %v1287
    %1394 = vmatprep.subr.bf16.mxu0 0
    %1395 = vmatpush1.bf16.msra.mxu0 %v1288
    %1396 = vmatprep.subr.bf16.mxu0 0
    %1397 = vmatpush1.bf16.msra.mxu0 %v1289
    %1398 = vmatprep.subr.bf16.mxu0 0
    %1399 = vmatpush1.bf16.msra.mxu0 %v1290
    %1400 = vmatprep.subr.bf16.mxu0 0
    %1401 = vmatpush1.bf16.msra.mxu0 %v1291
    %1402 = vmatprep.subr.bf16.mxu0 0
    %1403 = vmatpush1.bf16.msra.mxu0 %v1292
    %1404 = vmatprep.subr.bf16.mxu0 0
    %1405 = vmatpush1.bf16.msra.mxu0 %v1293
    %1406 = vmatprep.subr.bf16.mxu0 0
    %1407 = vmatpush1.bf16.msra.mxu0 %v1294
    %1408 = vmatprep.subr.bf16.mxu0 0
    %1409 = vmatpush1.bf16.msra.mxu0 0
    %1410 = vmatprep.subr.bf16.mxu0 0
    %1411 = vmatpush1.bf16.msra.mxu0 0
    %1412 = vmatprep.subr.bf16.mxu0 0
    %1413 = vmatpush1.bf16.msra.mxu0 0
    %1414 = vmatprep.subr.bf16.mxu0 0
    %1415 = vmatpush1.bf16.msra.mxu0 0
    %1416 = vmatprep.subr.bf16.mxu0 0
    %1417 = vmatpush1.bf16.msra.mxu0 0
    %1418 = vmatprep.subr.bf16.mxu0 0
    %1419 = vmatpush1.bf16.msra.mxu0 0
    %1420 = vmatprep.subr.bf16.mxu0 0
    %1421 = vmatpush1.bf16.msra.mxu0 0
    %1422 = vmatprep.subr.bf16.mxu0 0
    %1423 = vmatpush1.bf16.msra.mxu0 0
    %1424 = vmatprep.mubr.bf16.mxu0 0
    %1425 = vmatmul.mubr.bf16.gmra.mrb[0].mxu0 %v651
    %v1426 = vpop.f32.mrb[0].mxu0
    %v1427 = vadd.f32 0.0, %v1426
    %v1428 = vpop.f32.mrb[0].mxu0
    %v1429 = vpop.f32.mrb[0].mxu0
    %v1430 = vadd.f32 0.0, %v1429
    %v1431 = vpop.f32.mrb[0].mxu0
    %1432 = vmatprep.mubr.bf16.mxu0 0
    %1433 = vmatmul.mubr.bf16.gmra.mrb[0].mxu0 %v652
    %v1434 = vpop.f32.mrb[0].mxu0
    %v1435 = vadd.f32 0.0, %v1434
    %v1436 = vpop.f32.mrb[0].mxu0
    %v1437 = vpop.f32.mrb[0].mxu0
    %v1438 = vadd.f32 0.0, %v1437
    %v1439 = vpop.f32.mrb[0].mxu0
    %1440 = vmatprep.mubr.bf16.mxu0 0
    %1441 = vmatmul.mubr.bf16.gmra.mrb[0].mxu0 %v653
    %v1442 = vpop.f32.mrb[0].mxu0
    %v1443 = vadd.f32 0.0, %v1442
    %v1444 = vpop.f32.mrb[0].mxu0
    %v1445 = vpop.f32.mrb[0].mxu0
    %v1446 = vadd.f32 0.0, %v1445
    %v1447 = vpop.f32.mrb[0].mxu0
    %1448 = vmatprep.mubr.bf16.mxu0 0
    %1449 = vmatmul.mubr.bf16.gmra.mrb[0].mxu0 %v654
    %v1450 = vpop.f32.mrb[0].mxu0
    %v1451 = vadd.f32 0.0, %v1450
    %v1452 = vpop.f32.mrb[0].mxu0
    %v1453 = vpop.f32.mrb[0].mxu0
    %v1454 = vadd.f32 0.0, %v1453
    %v1455 = vpop.f32.mrb[0].mxu0
    %1456 = vmatprep.mubr.bf16.mxu0 0
    %1457 = vmatmul.mubr.bf16.gmra.mrb[0].mxu0 %v655
    %v1458 = vpop.f32.mrb[0].mxu0
    %v1459 = vadd.f32 0.0, %v1458
    %v1460 = vpop.f32.mrb[0].mxu0
    %v1461 = vpop.f32.mrb[0].mxu0
    %v1462 = vadd.f32 0.0, %v1461
    %v1463 = vpop.f32.mrb[0].mxu0
    %1464 = vmatprep.mubr.bf16.mxu0 0
    %1465 = vmatmul.mubr.bf16.gmra.mrb[0].mxu0 %v656
    %v1466 = vpop.f32.mrb[0].mxu0
    %v1467 = vadd.f32 0.0, %v1466
    %v1468 = vpop.f32.mrb[0].mxu0
    %v1469 = vpop.f32.mrb[0].mxu0
    %v1470 = vadd.f32 0.0, %v1469
    %v1471 = vpop.f32.mrb[0].mxu0
    %1472 = vmatprep.mubr.bf16.mxu0 0
    %1473 = vmatmul.mubr.bf16.gmra.mrb[0].mxu0 %v657
    %v1474 = vpop.f32.mrb[0].mxu0
    %v1475 = vadd.f32 0.0, %v1474
    %v1476 = vpop.f32.mrb[0].mxu0
    %v1477 = vpop.f32.mrb[0].mxu0
    %v1478 = vadd.f32 0.0, %v1477
    %v1479 = vpop.f32.mrb[0].mxu0
    %1480 = vmatprep.mubr.bf16.mxu0 0
    %1481 = vmatmul.mubr.bf16.gmra.mrb[0].mxu0 %v658
    %v1482 = vpop.f32.mrb[0].mxu0
    %v1483 = vadd.f32 0.0, %v1482
    %v1484 = vpop.f32.mrb[0].mxu0
    %v1485 = vpop.f32.mrb[0].mxu0
    %v1486 = vadd.f32 0.0, %v1485
    %v1487 = vpop.f32.mrb[0].mxu0
    %1488 = vdwg.mxu0
    %v1489 = vpack.c.bf16 %v1333, %v1330
    %v1490 = vpack.c.bf16 %v1341, %v1338
    %v1491 = vpack.c.bf16 %v1349, %v1346
    %v1492 = vpack.c.bf16 %v1357, %v1354
    %v1493 = vpack.c.bf16 %v1365, %v1362
    %v1494 = vpack.c.bf16 %v1373, %v1370
    %v1495 = vpack.c.bf16 %v1381, %v1378
    %v1496 = vpack.c.bf16 %v1389, %v1386
    %v1497 = vpack.c.bf16 %v1430, %v1427
    %v1498 = vpack.c.bf16 %v1438, %v1435
    %v1499 = vpack.c.bf16 %v1446, %v1443
    %v1500 = vpack.c.bf16 %v1454, %v1451
    %v1501 = vpack.c.bf16 %v1462, %v1459
    %v1502 = vpack.c.bf16 %v1470, %v1467
    %v1503 = vpack.c.bf16 %v1478, %v1475
    %v1504 = vpack.c.bf16 %v1486, %v1483
    %v1505 = vld [vmem:[#allocation4] sm:$0xf]
    %v1506 = vld [vmem:[#allocation4 + $0x4] sm:$0xf]
    %v1507 = vld [vmem:[#allocation4 + $0x8] sm:$0xf]
    %v1508 = vld [vmem:[#allocation4 + $0xc] sm:$0xf]
    %v1509 = vld [vmem:[#allocation4 + $0x10] sm:$0xf]
    %v1510 = vld [vmem:[#allocation4 + $0x14] sm:$0xf]
    %v1511 = vld [vmem:[#allocation4 + $0x18] sm:$0xf]
    %v1512 = vld [vmem:[#allocation4 + $0x1c] sm:$0xf]
    %v1513 = vld [vmem:[#allocation4 + $0x20] sm:$0xf]
    %v1514 = vld [vmem:[#allocation4 + $0x24] sm:$0xf]
    %v1515 = vld [vmem:[#allocation4 + $0x28] sm:$0xf]
    %v1516 = vld [vmem:[#allocation4 + $0x2c] sm:$0xf]
    %v1517 = vld [vmem:[#allocation4 + $0x30] sm:$0xf]
    %v1518 = vld [vmem:[#allocation4 + $0x34] sm:$0xf]
    %v1519 = vld [vmem:[#allocation4 + $0x38] sm:$0xf]
    %v1520 = vld [vmem:[#allocation4 + $0x3c] sm:$0xf]
    %v1537 = vunpack.c.l.b16 %v1505
    %v1538 = vunpack.c.l.b16 %v1506
    %v1539 = vunpack.c.l.b16 %v1507
    %v1540 = vunpack.c.l.b16 %v1508
    %v1541 = vunpack.c.l.b16 %v1509
    %v1542 = vunpack.c.l.b16 %v1510
    %v1543 = vunpack.c.l.b16 %v1511
    %v1544 = vunpack.c.l.b16 %v1512
    %v1545 = vunpack.c.l.b16 %v1513
    %v1546 = vunpack.c.l.b16 %v1514
    %v1547 = vunpack.c.l.b16 %v1515
    %v1548 = vunpack.c.l.b16 %v1516
    %v1549 = vunpack.c.l.b16 %v1517
    %v1550 = vunpack.c.l.b16 %v1518
    %v1551 = vunpack.c.l.b16 %v1519
    %v1552 = vunpack.c.l.b16 %v1520
    %v1553 = vpack.c.b16 %v1538, %v1537
    %v1554 = vpack.c.b16 %v1540, %v1539
    %v1555 = vpack.c.b16 %v1542, %v1541
    %v1556 = vpack.c.b16 %v1544, %v1543
    %v1557 = vpack.c.b16 %v1546, %v1545
    %v1558 = vpack.c.b16 %v1548, %v1547
    %v1559 = vpack.c.b16 %v1550, %v1549
    %v1560 = vpack.c.b16 %v1552, %v1551
    %1569 = vmatprep.subr.bf16.mxu0 0
    %1570 = vmatpush1.bf16.msra.mxu0 %v1553
    %1571 = vmatprep.subr.bf16.mxu0 0
    %1572 = vmatpush1.bf16.msra.mxu0 %v1554
    %1573 = vmatprep.subr.bf16.mxu0 0
    %1574 = vmatpush1.bf16.msra.mxu0 %v1555
    %1575 = vmatprep.subr.bf16.mxu0 0
    %1576 = vmatpush1.bf16.msra.mxu0 %v1556
    %1577 = vmatprep.subr.bf16.mxu0 0
    %1578 = vmatpush1.bf16.msra.mxu0 %v1557
    %1579 = vmatprep.subr.bf16.mxu0 0
    %1580 = vmatpush1.bf16.msra.mxu0 %v1558
    %1581 = vmatprep.subr.bf16.mxu0 0
    %1582 = vmatpush1.bf16.msra.mxu0 %v1559
    %1583 = vmatprep.subr.bf16.mxu0 0
    %1584 = vmatpush1.bf16.msra.mxu0 %v1560
    %1585 = vmatprep.subr.bf16.mxu0 0
    %1586 = vmatpush1.bf16.msra.mxu0 0
    %1587 = vmatprep.subr.bf16.mxu0 0
    %1588 = vmatpush1.bf16.msra.mxu0 0
    %1589 = vmatprep.subr.bf16.mxu0 0
    %1590 = vmatpush1.bf16.msra.mxu0 0
    %1591 = vmatprep.subr.bf16.mxu0 0
    %1592 = vmatpush1.bf16.msra.mxu0 0
    %1593 = vmatprep.subr.bf16.mxu0 0
    %1594 = vmatpush1.bf16.msra.mxu0 0
    %1595 = vmatprep.subr.bf16.mxu0 0
    %1596 = vmatpush1.bf16.msra.mxu0 0
    %1597 = vmatprep.subr.bf16.mxu0 0
    %1598 = vmatpush1.bf16.msra.mxu0 0
    %1599 = vmatprep.subr.bf16.mxu0 0
    %1600 = vmatpush1.bf16.msra.mxu0 0
    %1601 = vmatprep.mubr.bf16.mxu0 0
    %1602 = vmatmul.mubr.bf16.gmra.mrb[0].mxu0 %v1489
    %v1603 = vpop.f32.mrb[0].mxu0
    %v1604 = vadd.f32 0.0, %v1603
    %v1605 = vpop.f32.mrb[0].mxu0
    %v1606 = vpop.f32.mrb[0].mxu0
    %v1607 = vadd.f32 0.0, %v1606
    %v1608 = vpop.f32.mrb[0].mxu0
    %1609 = vmatprep.mubr.bf16.mxu0 0
    %1610 = vmatmul.mubr.bf16.gmra.mrb[0].mxu0 %v1490
    %v1611 = vpop.f32.mrb[0].mxu0
    %v1612 = vadd.f32 0.0, %v1611
    %v1613 = vpop.f32.mrb[0].mxu0
    %v1614 = vpop.f32.mrb[0].mxu0
    %v1615 = vadd.f32 0.0, %v1614
    %v1616 = vpop.f32.mrb[0].mxu0
    %1617 = vmatprep.mubr.bf16.mxu0 0
    %1618 = vmatmul.mubr.bf16.gmra.mrb[0].mxu0 %v1491
    %v1619 = vpop.f32.mrb[0].mxu0
    %v1620 = vadd.f32 0.0, %v1619
    %v1621 = vpop.f32.mrb[0].mxu0
    %v1622 = vpop.f32.mrb[0].mxu0
    %v1623 = vadd.f32 0.0, %v1622
    %v1624 = vpop.f32.mrb[0].mxu0
    %1625 = vmatprep.mubr.bf16.mxu0 0
    %1626 = vmatmul.mubr.bf16.gmra.mrb[0].mxu0 %v1492
    %v1627 = vpop.f32.mrb[0].mxu0
    %v1628 = vadd.f32 0.0, %v1627
    %v1629 = vpop.f32.mrb[0].mxu0
    %v1630 = vpop.f32.mrb[0].mxu0
    %v1631 = vadd.f32 0.0, %v1630
    %v1632 = vpop.f32.mrb[0].mxu0
    %1633 = vmatprep.mubr.bf16.mxu0 0
    %1634 = vmatmul.mubr.bf16.gmra.mrb[0].mxu0 %v1493
    %v1635 = vpop.f32.mrb[0].mxu0
    %v1636 = vadd.f32 0.0, %v1635
    %v1637 = vpop.f32.mrb[0].mxu0
    %v1638 = vpop.f32.mrb[0].mxu0
    %v1639 = vadd.f32 0.0, %v1638
    %v1640 = vpop.f32.mrb[0].mxu0
    %1641 = vmatprep.mubr.bf16.mxu0 0
    %1642 = vmatmul.mubr.bf16.gmra.mrb[0].mxu0 %v1494
    %v1643 = vpop.f32.mrb[0].mxu0
    %v1644 = vadd.f32 0.0, %v1643
    %v1645 = vpop.f32.mrb[0].mxu0
    %v1646 = vpop.f32.mrb[0].mxu0
    %v1647 = vadd.f32 0.0, %v1646
    %v1648 = vpop.f32.mrb[0].mxu0
    %1649 = vmatprep.mubr.bf16.mxu0 0
    %1650 = vmatmul.mubr.bf16.gmra.mrb[0].mxu0 %v1495
    %v1651 = vpop.f32.mrb[0].mxu0
    %v1652 = vadd.f32 0.0, %v1651
    %v1653 = vpop.f32.mrb[0].mxu0
    %v1654 = vpop.f32.mrb[0].mxu0
    %v1655 = vadd.f32 0.0, %v1654
    %v1656 = vpop.f32.mrb[0].mxu0
    %1657 = vmatprep.mubr.bf16.mxu0 0
    %1658 = vmatmul.mubr.bf16.gmra.mrb[0].mxu0 %v1496
    %v1659 = vpop.f32.mrb[0].mxu0
    %v1660 = vadd.f32 0.0, %v1659
    %v1661 = vpop.f32.mrb[0].mxu0
    %v1662 = vpop.f32.mrb[0].mxu0
    %v1663 = vadd.f32 0.0, %v1662
    %v1664 = vpop.f32.mrb[0].mxu0
    %1665 = vmatprep.mubr.bf16.mxu0 0
    %1666 = vmatmul.mubr.bf16.gmra.mrb[0].mxu0 %v1497
    %v1667 = vpop.f32.mrb[0].mxu0
    %v1668 = vadd.f32 0.0, %v1667
    %v1669 = vpop.f32.mrb[0].mxu0
    %v1670 = vpop.f32.mrb[0].mxu0
    %v1671 = vadd.f32 0.0, %v1670
    %v1672 = vpop.f32.mrb[0].mxu0
    %1673 = vmatprep.mubr.bf16.mxu0 0
    %1674 = vmatmul.mubr.bf16.gmra.mrb[0].mxu0 %v1498
    %v1675 = vpop.f32.mrb[0].mxu0
    %v1676 = vadd.f32 0.0, %v1675
    %v1677 = vpop.f32.mrb[0].mxu0
    %v1678 = vpop.f32.mrb[0].mxu0
    %v1679 = vadd.f32 0.0, %v1678
    %v1680 = vpop.f32.mrb[0].mxu0
    %1681 = vmatprep.mubr.bf16.mxu0 0
    %1682 = vmatmul.mubr.bf16.gmra.mrb[0].mxu0 %v1499
    %v1683 = vpop.f32.mrb[0].mxu0
    %v1684 = vadd.f32 0.0, %v1683
    %v1685 = vpop.f32.mrb[0].mxu0
    %v1686 = vpop.f32.mrb[0].mxu0
    %v1687 = vadd.f32 0.0, %v1686
    %v1688 = vpop.f32.mrb[0].mxu0
    %1689 = vmatprep.mubr.bf16.mxu0 0
    %1690 = vmatmul.mubr.bf16.gmra.mrb[0].mxu0 %v1500
    %v1691 = vpop.f32.mrb[0].mxu0
    %v1692 = vadd.f32 0.0, %v1691
    %v1693 = vpop.f32.mrb[0].mxu0
    %v1694 = vpop.f32.mrb[0].mxu0
    %v1695 = vadd.f32 0.0, %v1694
    %v1696 = vpop.f32.mrb[0].mxu0
    %1697 = vmatprep.mubr.bf16.mxu0 0
    %1698 = vmatmul.mubr.bf16.gmra.mrb[0].mxu0 %v1501
    %v1699 = vpop.f32.mrb[0].mxu0
    %v1700 = vadd.f32 0.0, %v1699
    %v1701 = vpop.f32.mrb[0].mxu0
    %v1702 = vpop.f32.mrb[0].mxu0
    %v1703 = vadd.f32 0.0, %v1702
    %v1704 = vpop.f32.mrb[0].mxu0
    %1705 = vmatprep.mubr.bf16.mxu0 0
    %1706 = vmatmul.mubr.bf16.gmra.mrb[0].mxu0 %v1502
    %v1707 = vpop.f32.mrb[0].mxu0
    %v1708 = vadd.f32 0.0, %v1707
    %v1709 = vpop.f32.mrb[0].mxu0
    %v1710 = vpop.f32.mrb[0].mxu0
    %v1711 = vadd.f32 0.0, %v1710
    %v1712 = vpop.f32.mrb[0].mxu0
    %1713 = vmatprep.mubr.bf16.mxu0 0
    %1714 = vmatmul.mubr.bf16.gmra.mrb[0].mxu0 %v1503
    %v1715 = vpop.f32.mrb[0].mxu0
    %v1716 = vadd.f32 0.0, %v1715
    %v1717 = vpop.f32.mrb[0].mxu0
    %v1718 = vpop.f32.mrb[0].mxu0
    %v1719 = vadd.f32 0.0, %v1718
    %v1720 = vpop.f32.mrb[0].mxu0
    %1721 = vmatprep.mubr.bf16.mxu0 0
    %1722 = vmatmul.mubr.bf16.gmra.mrb[0].mxu0 %v1504
    %v1723 = vpop.f32.mrb[0].mxu0
    %v1724 = vadd.f32 0.0, %v1723
    %v1725 = vpop.f32.mrb[0].mxu0
    %v1726 = vpop.f32.mrb[0].mxu0
    %v1727 = vadd.f32 0.0, %v1726
    %v1728 = vpop.f32.mrb[0].mxu0
    %1729 = vdwg.mxu0
    %v1730 = vmax.f32 %v1604, 0.0
    %v1731 = vmax.f32 %v1607, 0.0
    %v1732 = vmax.f32 %v1612, 0.0
    %v1733 = vmax.f32 %v1615, 0.0
    %v1734 = vmax.f32 %v1620, 0.0
    %v1735 = vmax.f32 %v1623, 0.0
    %v1736 = vmax.f32 %v1628, 0.0
    %v1737 = vmax.f32 %v1631, 0.0
    %v1738 = vmax.f32 %v1636, 0.0
    %v1739 = vmax.f32 %v1639, 0.0
    %v1740 = vmax.f32 %v1644, 0.0
    %v1741 = vmax.f32 %v1647, 0.0
    %v1742 = vmax.f32 %v1652, 0.0
    %v1743 = vmax.f32 %v1655, 0.0
    %v1744 = vmax.f32 %v1660, 0.0
    %v1745 = vmax.f32 %v1663, 0.0
    %v1746 = vmax.f32 %v1668, 0.0
    %v1747 = vmax.f32 %v1671, 0.0
    %v1748 = vmax.f32 %v1676, 0.0
    %v1749 = vmax.f32 %v1679, 0.0
    %v1750 = vmax.f32 %v1684, 0.0
    %v1751 = vmax.f32 %v1687, 0.0
    %v1752 = vmax.f32 %v1692, 0.0
    %v1753 = vmax.f32 %v1695, 0.0
    %v1754 = vmax.f32 %v1700, 0.0
    %v1755 = vmax.f32 %v1703, 0.0
    %v1756 = vmax.f32 %v1708, 0.0
    %v1757 = vmax.f32 %v1711, 0.0
    %v1758 = vmax.f32 %v1716, 0.0
    %v1759 = vmax.f32 %v1719, 0.0
    %v1760 = vmax.f32 %v1724, 0.0
    %v1761 = vmax.f32 %v1727, 0.0
    %v1762 = vpack.c.bf16 %v1731, %v1730
    %v1763 = vpack.c.bf16 %v1733, %v1732
    %v1764 = vpack.c.bf16 %v1735, %v1734
    %v1765 = vpack.c.bf16 %v1737, %v1736
    %v1766 = vpack.c.bf16 %v1739, %v1738
    %v1767 = vpack.c.bf16 %v1741, %v1740
    %v1768 = vpack.c.bf16 %v1743, %v1742
    %v1769 = vpack.c.bf16 %v1745, %v1744
    %v1770 = vpack.c.bf16 %v1747, %v1746
    %v1771 = vpack.c.bf16 %v1749, %v1748
    %v1772 = vpack.c.bf16 %v1751, %v1750
    %v1773 = vpack.c.bf16 %v1753, %v1752
    %v1774 = vpack.c.bf16 %v1755, %v1754
    %v1775 = vpack.c.bf16 %v1757, %v1756
    %v1776 = vpack.c.bf16 %v1759, %v1758
    %v1777 = vpack.c.bf16 %v1761, %v1760
    %1778 = vmatprep.subr.bf16.mxu0 0
    %1779 = vmatpush1.bf16.msra.mxu0 %v1762
    %1780 = vmatprep.subr.bf16.mxu0 0
    %1781 = vmatpush1.bf16.msra.mxu0 %v1763
    %1782 = vmatprep.subr.bf16.mxu0 0
    %1783 = vmatpush1.bf16.msra.mxu0 %v1764
    %1784 = vmatprep.subr.bf16.mxu0 0
    %1785 = vmatpush1.bf16.msra.mxu0 %v1765
    %1786 = vmatprep.subr.bf16.mxu0 0
    %1787 = vmatpush1.bf16.msra.mxu0 %v1766
    %1788 = vmatprep.subr.bf16.mxu0 0
    %1789 = vmatpush1.bf16.msra.mxu0 %v1767
    %1790 = vmatprep.subr.bf16.mxu0 0
    %1791 = vmatpush1.bf16.msra.mxu0 %v1768
    %1792 = vmatprep.subr.bf16.mxu0 0
    %1793 = vmatpush1.bf16.msra.mxu0 %v1769
    %1794 = vmatprep.subr.bf16.mxu0 0
    %1795 = vmatpush1.bf16.msra.mxu0 0
    %1796 = vmatprep.subr.bf16.mxu0 0
    %1797 = vmatpush1.bf16.msra.mxu0 0
    %1798 = vmatprep.subr.bf16.mxu0 0
    %1799 = vmatpush1.bf16.msra.mxu0 0
    %1800 = vmatprep.subr.bf16.mxu0 0
    %1801 = vmatpush1.bf16.msra.mxu0 0
    %1802 = vmatprep.subr.bf16.mxu0 0
    %1803 = vmatpush1.bf16.msra.mxu0 0
    %1804 = vmatprep.subr.bf16.mxu0 0
    %1805 = vmatpush1.bf16.msra.mxu0 0
    %1806 = vmatprep.subr.bf16.mxu0 0
    %1807 = vmatpush1.bf16.msra.mxu0 0
    %1808 = vmatprep.subr.bf16.mxu0 0
    %1809 = vmatpush1.bf16.msra.mxu0 0
    %1810 = vmatprep.mubr.bf16.mxu0 0
    %1811 = vmatmul.mubr.bf16.gmra.mrb[0].mxu0 %v506
    %v1812 = vpop.f32.mrb[0].mxu0
    %v1813 = vadd.f32 0.0, %v1812
    %v1814 = vpop.f32.mrb[0].mxu0
    %v1815 = vpop.f32.mrb[0].mxu0
    %v1816 = vadd.f32 0.0, %v1815
    %v1817 = vpop.f32.mrb[0].mxu0
    %1818 = vmatprep.mubr.bf16.mxu0 0
    %1819 = vmatmul.mubr.bf16.gmra.mrb[0].mxu0 %v507
    %v1820 = vpop.f32.mrb[0].mxu0
    %v1821 = vadd.f32 0.0, %v1820
    %v1822 = vpop.f32.mrb[0].mxu0
    %v1823 = vpop.f32.mrb[0].mxu0
    %v1824 = vadd.f32 0.0, %v1823
    %v1825 = vpop.f32.mrb[0].mxu0
    %1826 = vmatprep.mubr.bf16.mxu0 0
    %1827 = vmatmul.mubr.bf16.gmra.mrb[0].mxu0 %v508
    %v1828 = vpop.f32.mrb[0].mxu0
    %v1829 = vadd.f32 0.0, %v1828
    %v1830 = vpop.f32.mrb[0].mxu0
    %v1831 = vpop.f32.mrb[0].mxu0
    %v1832 = vadd.f32 0.0, %v1831
    %v1833 = vpop.f32.mrb[0].mxu0
    %1834 = vmatprep.mubr.bf16.mxu0 0
    %1835 = vmatmul.mubr.bf16.gmra.mrb[0].mxu0 %v509
    %v1836 = vpop.f32.mrb[0].mxu0
    %v1837 = vadd.f32 0.0, %v1836
    %v1838 = vpop.f32.mrb[0].mxu0
    %v1839 = vpop.f32.mrb[0].mxu0
    %v1840 = vadd.f32 0.0, %v1839
    %v1841 = vpop.f32.mrb[0].mxu0
    %1842 = vmatprep.mubr.bf16.mxu0 0
    %1843 = vmatmul.mubr.bf16.gmra.mrb[0].mxu0 %v510
    %v1844 = vpop.f32.mrb[0].mxu0
    %v1845 = vadd.f32 0.0, %v1844
    %v1846 = vpop.f32.mrb[0].mxu0
    %v1847 = vpop.f32.mrb[0].mxu0
    %v1848 = vadd.f32 0.0, %v1847
    %v1849 = vpop.f32.mrb[0].mxu0
    %1850 = vmatprep.mubr.bf16.mxu0 0
    %1851 = vmatmul.mubr.bf16.gmra.mrb[0].mxu0 %v511
    %v1852 = vpop.f32.mrb[0].mxu0
    %v1853 = vadd.f32 0.0, %v1852
    %v1854 = vpop.f32.mrb[0].mxu0
    %v1855 = vpop.f32.mrb[0].mxu0
    %v1856 = vadd.f32 0.0, %v1855
    %v1857 = vpop.f32.mrb[0].mxu0
    %1858 = vmatprep.mubr.bf16.mxu0 0
    %1859 = vmatmul.mubr.bf16.gmra.mrb[0].mxu0 %v512
    %v1860 = vpop.f32.mrb[0].mxu0
    %v1861 = vadd.f32 0.0, %v1860
    %v1862 = vpop.f32.mrb[0].mxu0
    %v1863 = vpop.f32.mrb[0].mxu0
    %v1864 = vadd.f32 0.0, %v1863
    %v1865 = vpop.f32.mrb[0].mxu0
    %1866 = vmatprep.mubr.bf16.mxu0 0
    %1867 = vmatmul.mubr.bf16.gmra.mrb[0].mxu0 %v513
    %v1868 = vpop.f32.mrb[0].mxu0
    %v1869 = vadd.f32 0.0, %v1868
    %v1870 = vpop.f32.mrb[0].mxu0
    %v1871 = vpop.f32.mrb[0].mxu0
    %v1872 = vadd.f32 0.0, %v1871
    %v1873 = vpop.f32.mrb[0].mxu0
    %1874 = vdwg.mxu0
    %1875 = vmatprep.subr.bf16.mxu0 0
    %1876 = vmatpush1.bf16.msra.mxu0 %v1770
    %1877 = vmatprep.subr.bf16.mxu0 0
    %1878 = vmatpush1.bf16.msra.mxu0 %v1771
    %1879 = vmatprep.subr.bf16.mxu0 0
    %1880 = vmatpush1.bf16.msra.mxu0 %v1772
    %1881 = vmatprep.subr.bf16.mxu0 0
    %1882 = vmatpush1.bf16.msra.mxu0 %v1773
    %1883 = vmatprep.subr.bf16.mxu0 0
    %1884 = vmatpush1.bf16.msra.mxu0 %v1774
    %1885 = vmatprep.subr.bf16.mxu0 0
    %1886 = vmatpush1.bf16.msra.mxu0 %v1775
    %1887 = vmatprep.subr.bf16.mxu0 0
    %1888 = vmatpush1.bf16.msra.mxu0 %v1776
    %1889 = vmatprep.subr.bf16.mxu0 0
    %1890 = vmatpush1.bf16.msra.mxu0 %v1777
    %1891 = vmatprep.subr.bf16.mxu0 0
    %1892 = vmatpush1.bf16.msra.mxu0 0
    %1893 = vmatprep.subr.bf16.mxu0 0
    %1894 = vmatpush1.bf16.msra.mxu0 0
    %1895 = vmatprep.subr.bf16.mxu0 0
    %1896 = vmatpush1.bf16.msra.mxu0 0
    %1897 = vmatprep.subr.bf16.mxu0 0
    %1898 = vmatpush1.bf16.msra.mxu0 0
    %1899 = vmatprep.subr.bf16.mxu0 0
    %1900 = vmatpush1.bf16.msra.mxu0 0
    %1901 = vmatprep.subr.bf16.mxu0 0
    %1902 = vmatpush1.bf16.msra.mxu0 0
    %1903 = vmatprep.subr.bf16.mxu0 0
    %1904 = vmatpush1.bf16.msra.mxu0 0
    %1905 = vmatprep.subr.bf16.mxu0 0
    %1906 = vmatpush1.bf16.msra.mxu0 0
    %1907 = vmatprep.mubr.bf16.mxu0 0
    %1908 = vmatmul.mubr.bf16.gmra.mrb[0].mxu0 %v651
    %v1909 = vpop.f32.mrb[0].mxu0
    %v1910 = vadd.f32 0.0, %v1909
    %v1911 = vpop.f32.mrb[0].mxu0
    %v1912 = vpop.f32.mrb[0].mxu0
    %v1913 = vadd.f32 0.0, %v1912
    %v1914 = vpop.f32.mrb[0].mxu0
    %1915 = vmatprep.mubr.bf16.mxu0 0
    %1916 = vmatmul.mubr.bf16.gmra.mrb[0].mxu0 %v652
    %v1917 = vpop.f32.mrb[0].mxu0
    %v1918 = vadd.f32 0.0, %v1917
    %v1919 = vpop.f32.mrb[0].mxu0
    %v1920 = vpop.f32.mrb[0].mxu0
    %v1921 = vadd.f32 0.0, %v1920
    %v1922 = vpop.f32.mrb[0].mxu0
    %1923 = vmatprep.mubr.bf16.mxu0 0
    %1924 = vmatmul.mubr.bf16.gmra.mrb[0].mxu0 %v653
    %v1925 = vpop.f32.mrb[0].mxu0
    %v1926 = vadd.f32 0.0, %v1925
    %v1927 = vpop.f32.mrb[0].mxu0
    %v1928 = vpop.f32.mrb[0].mxu0
    %v1929 = vadd.f32 0.0, %v1928
    %v1930 = vpop.f32.mrb[0].mxu0
    %1931 = vmatprep.mubr.bf16.mxu0 0
    %1932 = vmatmul.mubr.bf16.gmra.mrb[0].mxu0 %v654
    %v1933 = vpop.f32.mrb[0].mxu0
    %v1934 = vadd.f32 0.0, %v1933
    %v1935 = vpop.f32.mrb[0].mxu0
    %v1936 = vpop.f32.mrb[0].mxu0
    %v1937 = vadd.f32 0.0, %v1936
    %v1938 = vpop.f32.mrb[0].mxu0
    %1939 = vmatprep.mubr.bf16.mxu0 0
    %1940 = vmatmul.mubr.bf16.gmra.mrb[0].mxu0 %v655
    %v1941 = vpop.f32.mrb[0].mxu0
    %v1942 = vadd.f32 0.0, %v1941
    %v1943 = vpop.f32.mrb[0].mxu0
    %v1944 = vpop.f32.mrb[0].mxu0
    %v1945 = vadd.f32 0.0, %v1944
    %v1946 = vpop.f32.mrb[0].mxu0
    %1947 = vmatprep.mubr.bf16.mxu0 0
    %1948 = vmatmul.mubr.bf16.gmra.mrb[0].mxu0 %v656
    %v1949 = vpop.f32.mrb[0].mxu0
    %v1950 = vadd.f32 0.0, %v1949
    %v1951 = vpop.f32.mrb[0].mxu0
    %v1952 = vpop.f32.mrb[0].mxu0
    %v1953 = vadd.f32 0.0, %v1952
    %v1954 = vpop.f32.mrb[0].mxu0
    %1955 = vmatprep.mubr.bf16.mxu0 0
    %1956 = vmatmul.mubr.bf16.gmra.mrb[0].mxu0 %v657
    %v1957 = vpop.f32.mrb[0].mxu0
    %v1958 = vadd.f32 0.0, %v1957
    %v1959 = vpop.f32.mrb[0].mxu0
    %v1960 = vpop.f32.mrb[0].mxu0
    %v1961 = vadd.f32 0.0, %v1960
    %v1962 = vpop.f32.mrb[0].mxu0
    %1963 = vmatprep.mubr.bf16.mxu0 0
    %1964 = vmatmul.mubr.bf16.gmra.mrb[0].mxu0 %v658
    %v1965 = vpop.f32.mrb[0].mxu0
    %v1966 = vadd.f32 0.0, %v1965
    %v1967 = vpop.f32.mrb[0].mxu0
    %v1968 = vpop.f32.mrb[0].mxu0
    %v1969 = vadd.f32 0.0, %v1968
    %v1970 = vpop.f32.mrb[0].mxu0
    %1971 = vdwg.mxu0
    %v1972 = vpack.c.bf16 %v1816, %v1813
    %v1973 = vpack.c.bf16 %v1824, %v1821
    %v1974 = vpack.c.bf16 %v1832, %v1829
    %v1975 = vpack.c.bf16 %v1840, %v1837
    %v1976 = vpack.c.bf16 %v1848, %v1845
    %v1977 = vpack.c.bf16 %v1856, %v1853
    %v1978 = vpack.c.bf16 %v1864, %v1861
    %v1979 = vpack.c.bf16 %v1872, %v1869
    %v1980 = vpack.c.bf16 %v1913, %v1910
    %v1981 = vpack.c.bf16 %v1921, %v1918
    %v1982 = vpack.c.bf16 %v1929, %v1926
    %v1983 = vpack.c.bf16 %v1937, %v1934
    %v1984 = vpack.c.bf16 %v1945, %v1942
    %v1985 = vpack.c.bf16 %v1953, %v1950
    %v1986 = vpack.c.bf16 %v1961, %v1958
    %v1987 = vpack.c.bf16 %v1969, %v1966
    %v1988 = vld [vmem:[#allocation6] sm:$0xf]
    %v1989 = vld [vmem:[#allocation6 + $0x4] sm:$0xf]
    %v1990 = vld [vmem:[#allocation6 + $0x8] sm:$0xf]
    %v1991 = vld [vmem:[#allocation6 + $0xc] sm:$0xf]
    %v1992 = vld [vmem:[#allocation6 + $0x10] sm:$0xf]
    %v1993 = vld [vmem:[#allocation6 + $0x14] sm:$0xf]
    %v1994 = vld [vmem:[#allocation6 + $0x18] sm:$0xf]
    %v1995 = vld [vmem:[#allocation6 + $0x1c] sm:$0xf]
    %v1996 = vld [vmem:[#allocation6 + $0x20] sm:$0xf]
    %v1997 = vld [vmem:[#allocation6 + $0x24] sm:$0xf]
    %v1998 = vld [vmem:[#allocation6 + $0x28] sm:$0xf]
    %v1999 = vld [vmem:[#allocation6 + $0x2c] sm:$0xf]
    %v2000 = vld [vmem:[#allocation6 + $0x30] sm:$0xf]
    %v2001 = vld [vmem:[#allocation6 + $0x34] sm:$0xf]
    %v2002 = vld [vmem:[#allocation6 + $0x38] sm:$0xf]
    %v2003 = vld [vmem:[#allocation6 + $0x3c] sm:$0xf]
    %v2020 = vunpack.c.l.b16 %v1988
    %v2021 = vunpack.c.l.b16 %v1989
    %v2022 = vunpack.c.l.b16 %v1990
    %v2023 = vunpack.c.l.b16 %v1991
    %v2024 = vunpack.c.l.b16 %v1992
    %v2025 = vunpack.c.l.b16 %v1993
    %v2026 = vunpack.c.l.b16 %v1994
    %v2027 = vunpack.c.l.b16 %v1995
    %v2028 = vunpack.c.l.b16 %v1996
    %v2029 = vunpack.c.l.b16 %v1997
    %v2030 = vunpack.c.l.b16 %v1998
    %v2031 = vunpack.c.l.b16 %v1999
    %v2032 = vunpack.c.l.b16 %v2000
    %v2033 = vunpack.c.l.b16 %v2001
    %v2034 = vunpack.c.l.b16 %v2002
    %v2035 = vunpack.c.l.b16 %v2003
    %v2036 = vpack.c.b16 %v2021, %v2020
    %v2037 = vpack.c.b16 %v2023, %v2022
    %v2038 = vpack.c.b16 %v2025, %v2024
    %v2039 = vpack.c.b16 %v2027, %v2026
    %v2040 = vpack.c.b16 %v2029, %v2028
    %v2041 = vpack.c.b16 %v2031, %v2030
    %v2042 = vpack.c.b16 %v2033, %v2032
    %v2043 = vpack.c.b16 %v2035, %v2034
    %2052 = vmatprep.subr.bf16.mxu0 0
    %2053 = vmatpush1.bf16.msra.mxu0 %v2036
    %2054 = vmatprep.subr.bf16.mxu0 0
    %2055 = vmatpush1.bf16.msra.mxu0 %v2037
    %2056 = vmatprep.subr.bf16.mxu0 0
    %2057 = vmatpush1.bf16.msra.mxu0 %v2038
    %2058 = vmatprep.subr.bf16.mxu0 0
    %2059 = vmatpush1.bf16.msra.mxu0 %v2039
    %2060 = vmatprep.subr.bf16.mxu0 0
    %2061 = vmatpush1.bf16.msra.mxu0 %v2040
    %2062 = vmatprep.subr.bf16.mxu0 0
    %2063 = vmatpush1.bf16.msra.mxu0 %v2041
    %2064 = vmatprep.subr.bf16.mxu0 0
    %2065 = vmatpush1.bf16.msra.mxu0 %v2042
    %2066 = vmatprep.subr.bf16.mxu0 0
    %2067 = vmatpush1.bf16.msra.mxu0 %v2043
    %2068 = vmatprep.subr.bf16.mxu0 0
    %2069 = vmatpush1.bf16.msra.mxu0 0
    %2070 = vmatprep.subr.bf16.mxu0 0
    %2071 = vmatpush1.bf16.msra.mxu0 0
    %2072 = vmatprep.subr.bf16.mxu0 0
    %2073 = vmatpush1.bf16.msra.mxu0 0
    %2074 = vmatprep.subr.bf16.mxu0 0
    %2075 = vmatpush1.bf16.msra.mxu0 0
    %2076 = vmatprep.subr.bf16.mxu0 0
    %2077 = vmatpush1.bf16.msra.mxu0 0
    %2078 = vmatprep.subr.bf16.mxu0 0
    %2079 = vmatpush1.bf16.msra.mxu0 0
    %2080 = vmatprep.subr.bf16.mxu0 0
    %2081 = vmatpush1.bf16.msra.mxu0 0
    %2082 = vmatprep.subr.bf16.mxu0 0
    %2083 = vmatpush1.bf16.msra.mxu0 0
    %2084 = vmatprep.mubr.bf16.mxu0 0
    %2085 = vmatmul.mubr.bf16.gmra.mrb[0].mxu0 %v1972
    %v2086 = vpop.f32.mrb[0].mxu0
    %v2087 = vadd.f32 0.0, %v2086
    %v2088 = vpop.f32.mrb[0].mxu0
    %v2089 = vpop.f32.mrb[0].mxu0
    %v2090 = vadd.f32 0.0, %v2089
    %v2091 = vpop.f32.mrb[0].mxu0
    %2092 = vmatprep.mubr.bf16.mxu0 0
    %2093 = vmatmul.mubr.bf16.gmra.mrb[0].mxu0 %v1973
    %v2094 = vpop.f32.mrb[0].mxu0
    %v2095 = vadd.f32 0.0, %v2094
    %v2096 = vpop.f32.mrb[0].mxu0
    %v2097 = vpop.f32.mrb[0].mxu0
    %v2098 = vadd.f32 0.0, %v2097
    %v2099 = vpop.f32.mrb[0].mxu0
    %2100 = vmatprep.mubr.bf16.mxu0 0
    %2101 = vmatmul.mubr.bf16.gmra.mrb[0].mxu0 %v1974
    %v2102 = vpop.f32.mrb[0].mxu0
    %v2103 = vadd.f32 0.0, %v2102
    %v2104 = vpop.f32.mrb[0].mxu0
    %v2105 = vpop.f32.mrb[0].mxu0
    %v2106 = vadd.f32 0.0, %v2105
    %v2107 = vpop.f32.mrb[0].mxu0
    %2108 = vmatprep.mubr.bf16.mxu0 0
    %2109 = vmatmul.mubr.bf16.gmra.mrb[0].mxu0 %v1975
    %v2110 = vpop.f32.mrb[0].mxu0
    %v2111 = vadd.f32 0.0, %v2110
    %v2112 = vpop.f32.mrb[0].mxu0
    %v2113 = vpop.f32.mrb[0].mxu0
    %v2114 = vadd.f32 0.0, %v2113
    %v2115 = vpop.f32.mrb[0].mxu0
    %2116 = vmatprep.mubr.bf16.mxu0 0
    %2117 = vmatmul.mubr.bf16.gmra.mrb[0].mxu0 %v1976
    %v2118 = vpop.f32.mrb[0].mxu0
    %v2119 = vadd.f32 0.0, %v2118
    %v2120 = vpop.f32.mrb[0].mxu0
    %v2121 = vpop.f32.mrb[0].mxu0
    %v2122 = vadd.f32 0.0, %v2121
    %v2123 = vpop.f32.mrb[0].mxu0
    %2124 = vmatprep.mubr.bf16.mxu0 0
    %2125 = vmatmul.mubr.bf16.gmra.mrb[0].mxu0 %v1977
    %v2126 = vpop.f32.mrb[0].mxu0
    %v2127 = vadd.f32 0.0, %v2126
    %v2128 = vpop.f32.mrb[0].mxu0
    %v2129 = vpop.f32.mrb[0].mxu0
    %v2130 = vadd.f32 0.0, %v2129
    %v2131 = vpop.f32.mrb[0].mxu0
    %2132 = vmatprep.mubr.bf16.mxu0 0
    %2133 = vmatmul.mubr.bf16.gmra.mrb[0].mxu0 %v1978
    %v2134 = vpop.f32.mrb[0].mxu0
    %v2135 = vadd.f32 0.0, %v2134
    %v2136 = vpop.f32.mrb[0].mxu0
    %v2137 = vpop.f32.mrb[0].mxu0
    %v2138 = vadd.f32 0.0, %v2137
    %v2139 = vpop.f32.mrb[0].mxu0
    %2140 = vmatprep.mubr.bf16.mxu0 0
    %2141 = vmatmul.mubr.bf16.gmra.mrb[0].mxu0 %v1979
    %v2142 = vpop.f32.mrb[0].mxu0
    %v2143 = vadd.f32 0.0, %v2142
    %v2144 = vpop.f32.mrb[0].mxu0
    %v2145 = vpop.f32.mrb[0].mxu0
    %v2146 = vadd.f32 0.0, %v2145
    %v2147 = vpop.f32.mrb[0].mxu0
    %2148 = vmatprep.mubr.bf16.mxu0 0
    %2149 = vmatmul.mubr.bf16.gmra.mrb[0].mxu0 %v1980
    %v2150 = vpop.f32.mrb[0].mxu0
    %v2151 = vadd.f32 0.0, %v2150
    %v2152 = vpop.f32.mrb[0].mxu0
    %v2153 = vpop.f32.mrb[0].mxu0
    %v2154 = vadd.f32 0.0, %v2153
    %v2155 = vpop.f32.mrb[0].mxu0
    %2156 = vmatprep.mubr.bf16.mxu0 0
    %2157 = vmatmul.mubr.bf16.gmra.mrb[0].mxu0 %v1981
    %v2158 = vpop.f32.mrb[0].mxu0
    %v2159 = vadd.f32 0.0, %v2158
    %v2160 = vpop.f32.mrb[0].mxu0
    %v2161 = vpop.f32.mrb[0].mxu0
    %v2162 = vadd.f32 0.0, %v2161
    %v2163 = vpop.f32.mrb[0].mxu0
    %2164 = vmatprep.mubr.bf16.mxu0 0
    %2165 = vmatmul.mubr.bf16.gmra.mrb[0].mxu0 %v1982
    %v2166 = vpop.f32.mrb[0].mxu0
    %v2167 = vadd.f32 0.0, %v2166
    %v2168 = vpop.f32.mrb[0].mxu0
    %v2169 = vpop.f32.mrb[0].mxu0
    %v2170 = vadd.f32 0.0, %v2169
    %v2171 = vpop.f32.mrb[0].mxu0
    %2172 = vmatprep.mubr.bf16.mxu0 0
    %2173 = vmatmul.mubr.bf16.gmra.mrb[0].mxu0 %v1983
    %v2174 = vpop.f32.mrb[0].mxu0
    %v2175 = vadd.f32 0.0, %v2174
    %v2176 = vpop.f32.mrb[0].mxu0
    %v2177 = vpop.f32.mrb[0].mxu0
    %v2178 = vadd.f32 0.0, %v2177
    %v2179 = vpop.f32.mrb[0].mxu0
    %2180 = vmatprep.mubr.bf16.mxu0 0
    %2181 = vmatmul.mubr.bf16.gmra.mrb[0].mxu0 %v1984
    %v2182 = vpop.f32.mrb[0].mxu0
    %v2183 = vadd.f32 0.0, %v2182
    %v2184 = vpop.f32.mrb[0].mxu0
    %v2185 = vpop.f32.mrb[0].mxu0
    %v2186 = vadd.f32 0.0, %v2185
    %v2187 = vpop.f32.mrb[0].mxu0
    %2188 = vmatprep.mubr.bf16.mxu0 0
    %2189 = vmatmul.mubr.bf16.gmra.mrb[0].mxu0 %v1985
    %v2190 = vpop.f32.mrb[0].mxu0
    %v2191 = vadd.f32 0.0, %v2190
    %v2192 = vpop.f32.mrb[0].mxu0
    %v2193 = vpop.f32.mrb[0].mxu0
    %v2194 = vadd.f32 0.0, %v2193
    %v2195 = vpop.f32.mrb[0].mxu0
    %2196 = vmatprep.mubr.bf16.mxu0 0
    %2197 = vmatmul.mubr.bf16.gmra.mrb[0].mxu0 %v1986
    %v2198 = vpop.f32.mrb[0].mxu0
    %v2199 = vadd.f32 0.0, %v2198
    %v2200 = vpop.f32.mrb[0].mxu0
    %v2201 = vpop.f32.mrb[0].mxu0
    %v2202 = vadd.f32 0.0, %v2201
    %v2203 = vpop.f32.mrb[0].mxu0
    %2204 = vmatprep.mubr.bf16.mxu0 0
    %2205 = vmatmul.mubr.bf16.gmra.mrb[0].mxu0 %v1987
    %v2206 = vpop.f32.mrb[0].mxu0
    %v2207 = vadd.f32 0.0, %v2206
    %v2208 = vpop.f32.mrb[0].mxu0
    %v2209 = vpop.f32.mrb[0].mxu0
    %v2210 = vadd.f32 0.0, %v2209
    %v2211 = vpop.f32.mrb[0].mxu0
    %2212 = vdwg.mxu0
    %v2213 = vadd.f32 %v2087, %v2090
    %v2214 = vrot.slane %v2213, 4
    %v2215 = vadd.f32 %v2213, %v2214
    %v2216 = vrot.slane %v2215, 2
    %v2217 = vadd.f32 %v2215, %v2216
    %v2218 = vrot.slane %v2217, 1
    %v2219 = vadd.f32 %v2217, %v2218
    %v2220 = vadd.f32 %v2095, %v2098
    %v2221 = vrot.slane %v2220, 4
    %v2222 = vadd.f32 %v2220, %v2221
    %v2223 = vrot.slane %v2222, 2
    %v2224 = vadd.f32 %v2222, %v2223
    %v2225 = vrot.slane %v2224, 1
    %v2226 = vadd.f32 %v2224, %v2225
    %v2227 = vadd.f32 %v2103, %v2106
    %v2228 = vrot.slane %v2227, 4
    %v2229 = vadd.f32 %v2227, %v2228
    %v2230 = vrot.slane %v2229, 2
    %v2231 = vadd.f32 %v2229, %v2230
    %v2232 = vrot.slane %v2231, 1
    %v2233 = vadd.f32 %v2231, %v2232
    %v2234 = vadd.f32 %v2111, %v2114
    %v2235 = vrot.slane %v2234, 4
    %v2236 = vadd.f32 %v2234, %v2235
    %v2237 = vrot.slane %v2236, 2
    %v2238 = vadd.f32 %v2236, %v2237
    %v2239 = vrot.slane %v2238, 1
    %v2240 = vadd.f32 %v2238, %v2239
    %v2241 = vadd.f32 %v2119, %v2122
    %v2242 = vrot.slane %v2241, 4
    %v2243 = vadd.f32 %v2241, %v2242
    %v2244 = vrot.slane %v2243, 2
    %v2245 = vadd.f32 %v2243, %v2244
    %v2246 = vrot.slane %v2245, 1
    %v2247 = vadd.f32 %v2245, %v2246
    %v2248 = vadd.f32 %v2127, %v2130
    %v2249 = vrot.slane %v2248, 4
    %v2250 = vadd.f32 %v2248, %v2249
    %v2251 = vrot.slane %v2250, 2
    %v2252 = vadd.f32 %v2250, %v2251
    %v2253 = vrot.slane %v2252, 1
    %v2254 = vadd.f32 %v2252, %v2253
    %v2255 = vadd.f32 %v2135, %v2138
    %v2256 = vrot.slane %v2255, 4
    %v2257 = vadd.f32 %v2255, %v2256
    %v2258 = vrot.slane %v2257, 2
    %v2259 = vadd.f32 %v2257, %v2258
    %v2260 = vrot.slane %v2259, 1
    %v2261 = vadd.f32 %v2259, %v2260
    %v2262 = vadd.f32 %v2143, %v2146
    %v2263 = vrot.slane %v2262, 4
    %v2264 = vadd.f32 %v2262, %v2263
    %v2265 = vrot.slane %v2264, 2
    %v2266 = vadd.f32 %v2264, %v2265
    %v2267 = vrot.slane %v2266, 1
    %v2268 = vadd.f32 %v2266, %v2267
    %v2269 = vadd.f32 %v2151, %v2154
    %v2270 = vrot.slane %v2269, 4
    %v2271 = vadd.f32 %v2269, %v2270
    %v2272 = vrot.slane %v2271, 2
    %v2273 = vadd.f32 %v2271, %v2272
    %v2274 = vrot.slane %v2273, 1
    %v2275 = vadd.f32 %v2273, %v2274
    %v2276 = vadd.f32 %v2159, %v2162
    %v2277 = vrot.slane %v2276, 4
    %v2278 = vadd.f32 %v2276, %v2277
    %v2279 = vrot.slane %v2278, 2
    %v2280 = vadd.f32 %v2278, %v2279
    %v2281 = vrot.slane %v2280, 1
    %v2282 = vadd.f32 %v2280, %v2281
    %v2283 = vadd.f32 %v2167, %v2170
    %v2284 = vrot.slane %v2283, 4
    %v2285 = vadd.f32 %v2283, %v2284
    %v2286 = vrot.slane %v2285, 2
    %v2287 = vadd.f32 %v2285, %v2286
    %v2288 = vrot.slane %v2287, 1
    %v2289 = vadd.f32 %v2287, %v2288
    %v2290 = vadd.f32 %v2175, %v2178
    %v2291 = vrot.slane %v2290, 4
    %v2292 = vadd.f32 %v2290, %v2291
    %v2293 = vrot.slane %v2292, 2
    %v2294 = vadd.f32 %v2292, %v2293
    %v2295 = vrot.slane %v2294, 1
    %v2296 = vadd.f32 %v2294, %v2295
    %v2297 = vadd.f32 %v2183, %v2186
    %v2298 = vrot.slane %v2297, 4
    %v2299 = vadd.f32 %v2297, %v2298
    %v2300 = vrot.slane %v2299, 2
    %v2301 = vadd.f32 %v2299, %v2300
    %v2302 = vrot.slane %v2301, 1
    %v2303 = vadd.f32 %v2301, %v2302
    %v2304 = vadd.f32 %v2191, %v2194
    %v2305 = vrot.slane %v2304, 4
    %v2306 = vadd.f32 %v2304, %v2305
    %v2307 = vrot.slane %v2306, 2
    %v2308 = vadd.f32 %v2306, %v2307
    %v2309 = vrot.slane %v2308, 1
    %v2310 = vadd.f32 %v2308, %v2309
    %v2311 = vadd.f32 %v2199, %v2202
    %v2312 = vrot.slane %v2311, 4
    %v2313 = vadd.f32 %v2311, %v2312
    %v2314 = vrot.slane %v2313, 2
    %v2315 = vadd.f32 %v2313, %v2314
    %v2316 = vrot.slane %v2315, 1
    %v2317 = vadd.f32 %v2315, %v2316
    %v2318 = vadd.f32 %v2207, %v2210
    %v2319 = vrot.slane %v2318, 4
    %v2320 = vadd.f32 %v2318, %v2319
    %v2321 = vrot.slane %v2320, 2
    %v2322 = vadd.f32 %v2320, %v2321
    %v2323 = vrot.slane %v2322, 1
    %v2324 = vadd.f32 %v2322, %v2323
    %v2325 = vpack.c.bf16 %v2219, %v2219
    %v2326 = vpack.c.bf16 %v2226, %v2226
    %v2327 = vpack.c.bf16 %v2233, %v2233
    %v2328 = vpack.c.bf16 %v2240, %v2240
    %v2329 = vpack.c.bf16 %v2247, %v2247
    %v2330 = vpack.c.bf16 %v2254, %v2254
    %v2331 = vpack.c.bf16 %v2261, %v2261
    %v2332 = vpack.c.bf16 %v2268, %v2268
    %v2333 = vpack.c.bf16 %v2275, %v2275
    %v2334 = vpack.c.bf16 %v2282, %v2282
    %v2335 = vpack.c.bf16 %v2289, %v2289
    %v2336 = vpack.c.bf16 %v2296, %v2296
    %v2337 = vpack.c.bf16 %v2303, %v2303
    %v2338 = vpack.c.bf16 %v2310, %v2310
    %v2339 = vpack.c.bf16 %v2317, %v2317
    %v2340 = vpack.c.bf16 %v2324, %v2324
    %v2341 = vld [vmem:[#allocation7] sm:$0xf]
    %v2342 = vld [vmem:[#allocation7 + $0x4] sm:$0xf]
    %v2343 = vld [vmem:[#allocation7 + $0x8] sm:$0xf]
    %v2344 = vld [vmem:[#allocation7 + $0xc] sm:$0xf]
    %v2345 = vld [vmem:[#allocation7 + $0x10] sm:$0xf]
    %v2346 = vld [vmem:[#allocation7 + $0x14] sm:$0xf]
    %v2347 = vld [vmem:[#allocation7 + $0x18] sm:$0xf]
    %v2348 = vld [vmem:[#allocation7 + $0x1c] sm:$0xf]
    %v2349 = vld [vmem:[#allocation7 + $0x20] sm:$0xf]
    %v2350 = vld [vmem:[#allocation7 + $0x24] sm:$0xf]
    %v2351 = vld [vmem:[#allocation7 + $0x28] sm:$0xf]
    %v2352 = vld [vmem:[#allocation7 + $0x2c] sm:$0xf]
    %v2353 = vld [vmem:[#allocation7 + $0x30] sm:$0xf]
    %v2354 = vld [vmem:[#allocation7 + $0x34] sm:$0xf]
    %v2355 = vld [vmem:[#allocation7 + $0x38] sm:$0xf]
    %v2356 = vld [vmem:[#allocation7 + $0x3c] sm:$0xf]
    %v2373 = vunpack.c.l.b16 %v2325
    %v2374 = vunpack.c.l.b16 %v2326
    %v2375 = vunpack.c.l.b16 %v2327
    %v2376 = vunpack.c.l.b16 %v2328
    %v2377 = vunpack.c.l.b16 %v2329
    %v2378 = vunpack.c.l.b16 %v2330
    %v2379 = vunpack.c.l.b16 %v2331
    %v2380 = vunpack.c.l.b16 %v2332
    %v2381 = vunpack.c.l.b16 %v2333
    %v2382 = vunpack.c.l.b16 %v2334
    %v2383 = vunpack.c.l.b16 %v2335
    %v2384 = vunpack.c.l.b16 %v2336
    %v2385 = vunpack.c.l.b16 %v2337
    %v2386 = vunpack.c.l.b16 %v2338
    %v2387 = vunpack.c.l.b16 %v2339
    %v2388 = vunpack.c.l.b16 %v2340
    %vm2389 = vcmask 1041409
    %v2390 = vsel %vm2389, %v2374, %v2373
    %vm2391 = vcmask 1042434
    %v2392 = vsel %vm2391, %v2375, %v2390
    %vm2393 = vcmask 1043459
    %v2394 = vsel %vm2393, %v2376, %v2392
    %vm2395 = vcmask 1044484
    %v2396 = vsel %vm2395, %v2377, %v2394
    %vm2397 = vcmask 1045509
    %v2398 = vsel %vm2397, %v2378, %v2396
    %vm2399 = vcmask 1046534
    %v2400 = vsel %vm2399, %v2379, %v2398
    %vm2401 = vcmask 1047559
    %v2402 = vsel %vm2401, %v2380, %v2400
    %v2403 = vsel %vm2389, %v2382, %v2381
    %v2404 = vsel %vm2391, %v2383, %v2403
    %v2405 = vsel %vm2393, %v2384, %v2404
    %v2406 = vsel %vm2395, %v2385, %v2405
    %v2407 = vsel %vm2397, %v2386, %v2406
    %v2408 = vsel %vm2399, %v2387, %v2407
    %v2409 = vsel %vm2401, %v2388, %v2408
    %v2410 = vpack.c.b16 %v2409, %v2402
    %v2428 = vunpack.c.l.b16 %v2341
    %v2429 = vunpack.c.l.b16 %v2342
    %v2430 = vunpack.c.l.b16 %v2343
    %v2431 = vunpack.c.l.b16 %v2344
    %v2432 = vunpack.c.l.b16 %v2345
    %v2433 = vunpack.c.l.b16 %v2346
    %v2434 = vunpack.c.l.b16 %v2347
    %v2435 = vunpack.c.l.b16 %v2348
    %v2436 = vunpack.c.l.b16 %v2349
    %v2437 = vunpack.c.l.b16 %v2350
    %v2438 = vunpack.c.l.b16 %v2351
    %v2439 = vunpack.c.l.b16 %v2352
    %v2440 = vunpack.c.l.b16 %v2353
    %v2441 = vunpack.c.l.b16 %v2354
    %v2442 = vunpack.c.l.b16 %v2355
    %v2443 = vunpack.c.l.b16 %v2356
    %v2444 = vpack.c.b16 %v2429, %v2428
    %v2445 = vpack.c.b16 %v2431, %v2430
    %v2446 = vpack.c.b16 %v2433, %v2432
    %v2447 = vpack.c.b16 %v2435, %v2434
    %v2448 = vpack.c.b16 %v2437, %v2436
    %v2449 = vpack.c.b16 %v2439, %v2438
    %v2450 = vpack.c.b16 %v2441, %v2440
    %v2451 = vpack.c.b16 %v2443, %v2442
    %2460 = vmatprep.subr.bf16.mxu0 0
    %2461 = vmatpush1.bf16.msra.mxu0 %v2444
    %2462 = vmatprep.subr.bf16.mxu0 0
    %2463 = vmatpush1.bf16.msra.mxu0 %v2445
    %2464 = vmatprep.subr.bf16.mxu0 0
    %2465 = vmatpush1.bf16.msra.mxu0 %v2446
    %2466 = vmatprep.subr.bf16.mxu0 0
    %2467 = vmatpush1.bf16.msra.mxu0 %v2447
    %2468 = vmatprep.subr.bf16.mxu0 0
    %2469 = vmatpush1.bf16.msra.mxu0 %v2448
    %2470 = vmatprep.subr.bf16.mxu0 0
    %2471 = vmatpush1.bf16.msra.mxu0 %v2449
    %2472 = vmatprep.subr.bf16.mxu0 0
    %2473 = vmatpush1.bf16.msra.mxu0 %v2450
    %2474 = vmatprep.subr.bf16.mxu0 0
    %2475 = vmatpush1.bf16.msra.mxu0 %v2451
    %2476 = vmatprep.subr.bf16.mxu0 0
    %2477 = vmatpush1.bf16.msra.mxu0 0
    %2478 = vmatprep.subr.bf16.mxu0 0
    %2479 = vmatpush1.bf16.msra.mxu0 0
    %2480 = vmatprep.subr.bf16.mxu0 0
    %2481 = vmatpush1.bf16.msra.mxu0 0
    %2482 = vmatprep.subr.bf16.mxu0 0
    %2483 = vmatpush1.bf16.msra.mxu0 0
    %2484 = vmatprep.subr.bf16.mxu0 0
    %2485 = vmatpush1.bf16.msra.mxu0 0
    %2486 = vmatprep.subr.bf16.mxu0 0
    %2487 = vmatpush1.bf16.msra.mxu0 0
    %2488 = vmatprep.subr.bf16.mxu0 0
    %2489 = vmatpush1.bf16.msra.mxu0 0
    %2490 = vmatprep.subr.bf16.mxu0 0
    %2491 = vmatpush1.bf16.msra.mxu0 0
    %2492 = vmatprep.mubr.bf16.mxu0 0
    %2493 = vmatmul.mubr.bf16.gmra.mrb[0].mxu0 %v2410
    %v2494 = vpop.f32.mrb[0].mxu0
    %v2495 = vadd.f32 0.0, %v2494
    %v2496 = vpop.f32.mrb[0].mxu0
    %v2497 = vpop.f32.mrb[0].mxu0
    %v2498 = vadd.f32 0.0, %v2497
    %v2499 = vpop.f32.mrb[0].mxu0
    %2500 = vdwg.mxu0
    %v2501 = vrot.slane %v2495, 4
    %v2502 = vadd.f32 %v2495, %v2501
    %v2503 = vrot.slane %v2502, 2
    %v2504 = vadd.f32 %v2502, %v2503
    %v2505 = vrot.slane %v2504, 1
    %v2506 = vadd.f32 %v2504, %v2505
    %v2507 = vrot.slane %v2498, 4
    %v2508 = vadd.f32 %v2498, %v2507
    %v2509 = vrot.slane %v2508, 2
    %v2510 = vadd.f32 %v2508, %v2509
    %v2511 = vrot.slane %v2510, 1
    %v2512 = vadd.f32 %v2510, %v2511
    %v2513 = vrcp.pop 8.0
    %v2514 = vmul.f32 %v2506, %v2513
    %v2515 = vmul.f32 %v2512, %v2513
    %v2516 = vsub.f32 %v2495, %v2514
    %v2517 = vsub.f32 %v2498, %v2515
    %v2518 = vmul.f32 %v2516, %v2516
    %v2519 = vmul.f32 %v2517, %v2517
    %v2520 = vrot.slane %v2518, 4
    %v2521 = vadd.f32 %v2518, %v2520
    %v2522 = vrot.slane %v2521, 2
    %v2523 = vadd.f32 %v2521, %v2522
    %v2524 = vrot.slane %v2523, 1
    %v2525 = vadd.f32 %v2523, %v2524
    %v2526 = vrot.slane %v2519, 4
    %v2527 = vadd.f32 %v2519, %v2526
    %v2528 = vrot.slane %v2527, 2
    %v2529 = vadd.f32 %v2527, %v2528
    %v2530 = vrot.slane %v2529, 1
    %v2531 = vadd.f32 %v2529, %v2530
    %v2532 = vmul.f32 %v2525, %v2513
    %v2533 = vmul.f32 %v2531, %v2513
    %v2534 = vld [vmem:[%s7] sm:$0x1]
    %v2535 = vadd.f32 %v2532, 1e-05
    %v2536 = vadd.f32 %v2533, 1e-05
    %v2537 = vrsqrt.pop %v2535
    %v2538 = vrsqrt.pop %v2536
    %v2539 = vmul.f32 %v2534, %v2537
    %v2540 = vmul.f32 %v2534, %v2538
    %v2543 = vlaneseq
    %v2544 = vshrl.u32 %v2543, 7
    %v2545 = vsub.s32 0, %v2544
    %v2546 = vrot.slane %v2539, %v2545
    %v2547 = vlaneseq
    %v2548 = vshrl.u32 %v2547, 7
    %v2549 = vsub.s32 0, %v2548
    %v2550 = vrot.slane %v2540, %v2549
    %v2553 = vmul.f32 %v2516, %v2546
    %v2554 = vmul.f32 %v2517, %v2550
    %v2555 = vld [vmem:[%s8] sm:$0x1]
    %v2557 = vlaneseq
    %v2558 = vshrl.u32 %v2557, 7
    %v2559 = vsub.s32 0, %v2558
    %v2560 = vrot.slane %v2555, %v2559
    %v2562 = vadd.f32 %v2553, %v2560
    %v2563 = vadd.f32 %v2554, %v2560
    %v2564 = vmul.f32 %v2562, %v2562
    %v2565 = vmul.f32 %v2563, %v2563
    %2566 = vadd.xlane.f32.xlu0 %v2564
    %v2567 = vpop.xlane.xlu0 %2566
    %2568 = vadd.xlane.f32.xlu0 %v2565
    %v2569 = vpop.xlane.xlu0 %2568
    %v2570 = vmax.f32 %v2567, 1e-24
    %v2571 = vmax.f32 %v2569, 1e-24
    %v2572 = vrsqrt.pop %v2570
    %v2573 = vrsqrt.pop %v2571
    %v2574 = vmul.f32 %v2562, %v2572
    %v2575 = vmul.f32 %v2563, %v2573
    %2576 = vst [vmem:[%s9] sm:$0xff] %v2574
    %2577 = vst [vmem:[%s9 + $0x8] sm:$0xff] %v2575
    // Predicated region
    $region54: #{siamese_ple_forward.1} parent=1 // pred_check
      _
    $region55: #{siamese_ple_forward.1} parent=1 // pred_check_branch
      %2579 = sbr.rel (0) target = $region57
    $region56: #{siamese_ple_forward.1} parent=1 // pred_region
      _
    $region57: #{siamese_ple_forward.1} parent=1 // pred_fallthru
      _
    // Predicated region
    $region58: #{siamese_ple_forward.1} parent=1 // pred_check
      _
    $region59: #{siamese_ple_forward.1} parent=1 // pred_check_branch
      %2581 = sbr.rel (0) target = $region61
    $region60: #{siamese_ple_forward.1} parent=1 // pred_region
      _
    $region61: #{siamese_ple_forward.1} parent=1 // pred_fallthru
      _
    %2582 = vsyncpa [#allocation3], 1
    %2583 = vsyncpa [#allocation5], 1
    %2584 = vsyncpa [#allocation8], 1

</llo_original>
